<compile_context>
chip_gen: v7x
topology: tpu7x:2x2x1
jax: 0.10.0
libtpu: 0.0.40
codegen_flags: <defaults>
</compile_context>

<pallas_src>
import jax
import jax.numpy as jnp
from jax import lax
from jax.experimental import pallas as pl
from jax.experimental.pallas import tpu as pltpu

IMG_SHAPE = (1, 28, 28)
LATENT_DIM = 100
LAT_PAD = 128          # layer-1 contraction dim padded to a full lane tile
H1 = 128
H2 = 256
OUT = 28 * 28          # 784
OUT_PAD = 896          # 7 * 128 -> lane-dense output width
BN_EPS = 1e-5
VMEM_LIMIT_BYTES = 32 * 1024 * 1024


def _round_up(x, m):
    return (x + m - 1) // m * m


def _resident(shape):
    """BlockSpec for a weight/vector that stays resident across the batch grid."""
    # (pl.Buffered(1) single-buffering intentionally omitted: marginal win.)
    return pl.BlockSpec(shape, lambda i: (0, 0))


def _pick_batch_tile(B):
    """Batch tile: big enough to fill MXU M / amortize grid overhead, but keep
    >= 2 tiles when B > 128 so the 'parallel' axis can shard across v7x cores."""
    b8 = _round_up(B, 8)
    if b8 <= 128:
        return b8
    half = _round_up(-(-b8 // 2), 8)
    return min(512, half)


# -----------------------------------------------------------------------------
# Kernel factory (TB / B / 1/B are static at trace time -> closed over)
# -----------------------------------------------------------------------------
def _make_kernels(TB, B, inv_b):
    need_mask = (B % TB) != 0

    # Pass 1: accumulate BatchNorm batch statistics of the pre-BN activation
    #         h2 = relu(z @ W1 + b1) @ W2   (b2 cancels under batch-stats BN)
    def bn_stats_kernel(z_ref, w1_ref, b1_ref, w2_ref, sum_ref, sumsq_ref):
        @pl.when(pl.program_id(0) == 0)
        def _():
            sum_ref[...] = jnp.zeros_like(sum_ref)
            sumsq_ref[...] = jnp.zeros_like(sumsq_ref)

        z = z_ref[...]
        h1 = jnp.dot(z.astype(w1_ref.dtype), w1_ref[...],
                     preferred_element_type=jnp.float32) + b1_ref[...]
        h1 = jnp.maximum(h1, 0.0)
        h2 = jnp.dot(h1.astype(w2_ref.dtype), w2_ref[...],
                     preferred_element_type=jnp.float32)
        if need_mask:  # zero out padded batch rows (only when B % TB != 0)
            rows = (pl.program_id(0) * TB
                    + lax.broadcasted_iota(jnp.int32, (TB, 1), 0))
            h2 = h2 * (rows < B).astype(jnp.float32)
        sum_ref[...] += jnp.sum(h2, axis=0, keepdims=True)
        sumsq_ref[...] += jnp.sum(h2 * h2, axis=0, keepdims=True)

    # Pass 2: full forward; BN folded in-kernel into one FMA (no XLA glue)
    def generator_kernel(z_ref, w1_ref, b1_ref, w2_ref, sum_ref, sumsq_ref,
                         gamma_ref, beta_ref, w3_ref, b3_ref, out_ref):
        z = z_ref[...]
        h1 = jnp.dot(z.astype(w1_ref.dtype), w1_ref[...],
                     preferred_element_type=jnp.float32) + b1_ref[...]
        h1 = jnp.maximum(h1, 0.0)

        h2 = jnp.dot(h1.astype(w2_ref.dtype), w2_ref[...],
                     preferred_element_type=jnp.float32)

        # BatchNorm1d (training-mode batch stats) -> scale/shift, (1,256) math
        # on the EUP/VPU, negligible and overlapped with the surrounding dots.
        mean = sum_ref[...] * inv_b
        var = jnp.maximum(sumsq_ref[...] * inv_b - mean * mean, 0.0)  # biased
        scale = gamma_ref[...] * lax.rsqrt(var + BN_EPS)
        shift = beta_ref[...] - mean * scale
        h2 = jnp.maximum(h2 * scale + shift, 0.0)                     # BN + ReLU

        h3 = jnp.dot(h2.astype(w3_ref.dtype), w3_ref[...],
                     preferred_element_type=jnp.float32) + b3_ref[...]
        out_ref[...] = jnp.tanh(h3)

    return bn_stats_kernel, generator_kernel


# -----------------------------------------------------------------------------
# Parameter preparation (one-time): drop b2, pad K (layer 1) and N (layer 3),
# cast matmul weights (bf16 default; pass jnp.float32 for exact fidelity).
# -----------------------------------------------------------------------------
def prepare_params(params, matmul_dtype=jnp.bfloat16):
    w1, b1, w2, b2, gamma, beta, w3, b3 = params
    del b2  # exactly cancelled by the batch-mean subtraction of BatchNorm1d
    w1p = jnp.pad(w1, ((0, LAT_PAD - LATENT_DIM), (0, 0)))
    w3p = jnp.pad(w3, ((0, 0), (0, OUT_PAD - OUT)))
    b3p = jnp.pad(b3, ((0, 0), (0, OUT_PAD - OUT)))
    return dict(
        w1=w1p.astype(matmul_dtype), b1=b1.astype(jnp.float32),
        w2=w2.astype(matmul_dtype),
        gamma=gamma.astype(jnp.float32), beta=beta.astype(jnp.float32),
        w3=w3p.astype(matmul_dtype), b3=b3p.astype(jnp.float32),
    )


def generator_forward(z, p):
    """z: (B, LATENT_DIM) -> (B, 1, 28, 28) float32 (PyTorch training-mode BN)."""
    B = z.shape[0]
    TB = _pick_batch_tile(B)
    B_pad = _round_up(B, TB)
    nbt = B_pad // TB

    # Pad batch to a tile multiple and K from 100 -> 128 (zeros; w1 rows also 0).
    z_pad = jnp.pad(z.astype(jnp.float32),
                    ((0, B_pad - B), (0, LAT_PAD - LATENT_DIM)))

    w1, b1, w2 = p["w1"], p["b1"], p["w2"]
    gamma, beta = p["gamma"], p["beta"]
    w3, b3 = p["w3"], p["b3"]
    wbytes = jnp.dtype(w1.dtype).itemsize

    bn_stats_kernel, generator_kernel = _make_kernels(TB, B, 1.0 / float(B))

    # ---- pass 1: batch statistics of the pre-BN activation ------------------
    stats_cost = pl.CostEstimate(
        flops=int(2 * B_pad * (LAT_PAD * H1 + H1 * H2) + 3 * B_pad * H2),
        transcendentals=0,
        bytes_accessed=int(4 * B_pad * LAT_PAD
                           + wbytes * (LAT_PAD * H1 + H1 * H2)
                           + 4 * (H1 + 2 * H2)),
    )
    h2_sum, h2_sumsq = pl.pallas_call(
        bn_stats_kernel,
        grid=(nbt,),
        in_specs=[
            pl.BlockSpec((TB, LAT_PAD), lambda i: (i, 0)),
            _resident((LAT_PAD, H1)),
            _resident((1, H1)),
            _resident((H1, H2)),
        ],
        out_specs=[
            pl.BlockSpec((1, H2), lambda i: (0, 0)),
            pl.BlockSpec((1, H2), lambda i: (0, 0)),
        ],
        out_shape=[
            jax.ShapeDtypeStruct((1, H2), jnp.float32),
            jax.ShapeDtypeStruct((1, H2), jnp.float32),
        ],
        compiler_params=pltpu.CompilerParams(
            dimension_semantics=("arbitrary",),
            vmem_limit_bytes=VMEM_LIMIT_BYTES,
        ),
        cost_estimate=stats_cost,
    )(z_pad, w1, b1, w2)

    # ---- pass 2: full forward, batch-parallel, BN folded in-kernel ----------
    fwd_cost = pl.CostEstimate(
        flops=int(2 * B_pad * (LAT_PAD * H1 + H1 * H2 + H2 * OUT_PAD)),
        transcendentals=int(B_pad * OUT_PAD),
        bytes_accessed=int(4 * B_pad * (LAT_PAD + OUT_PAD)
                           + wbytes * (LAT_PAD * H1 + H1 * H2 + H2 * OUT_PAD)
                           + 4 * (H1 + 4 * H2 + OUT_PAD)),
    )
    img_pad = pl.pallas_call(
        generator_kernel,
        grid=(nbt,),
        in_specs=[
            pl.BlockSpec((TB, LAT_PAD), lambda i: (i, 0)),
            _resident((LAT_PAD, H1)),
            _resident((1, H1)),
            _resident((H1, H2)),
            _resident((1, H2)),        # h2_sum
            _resident((1, H2)),        # h2_sumsq
            _resident((1, H2)),        # gamma
            _resident((1, H2)),        # beta
            _resident((H2, OUT_PAD)),
            _resident((1, OUT_PAD)),
        ],
        out_specs=pl.BlockSpec((TB, OUT_PAD), lambda i: (i, 0)),
        out_shape=jax.ShapeDtypeStruct((B_pad, OUT_PAD), jnp.float32),
        compiler_params=pltpu.CompilerParams(
            dimension_semantics=("parallel",),
            vmem_limit_bytes=VMEM_LIMIT_BYTES,
        ),
        cost_estimate=fwd_cost,
    )(z_pad, w1, b1, w2, h2_sum, h2_sumsq, gamma, beta, w3, b3)

    # glue: drop batch/lane padding, NCHW view (img.view(z.size(0), *img_shape))
    return img_pad[:B, :OUT].reshape(B, *IMG_SHAPE)


# -----------------------------------------------------------------------------
# Reference (plain JAX, f32-accurate) and synthetic parameters
# -----------------------------------------------------------------------------
def generator_reference(z, params):
    w1, b1, w2, b2, gamma, beta, w3, b3 = params
    hp = lax.Precision.HIGHEST
    h1 = jnp.maximum(jnp.dot(z, w1, precision=hp) + b1, 0.0)
    h2 = jnp.dot(h1, w2, precision=hp) + b2
    mean = jnp.mean(h2, axis=0, keepdims=True)
    var = jnp.mean((h2 - mean) ** 2, axis=0, keepdims=True)
    h2n = (h2 - mean) * lax.rsqrt(var + BN_EPS) * gamma + beta
    h2n = jnp.maximum(h2n, 0.0)
    h3 = jnp.dot(h2n, w3, precision=hp) + b3
    return jnp.tanh(h3).reshape(z.shape[0], *IMG_SHAPE)


def init_params(key):
    """Deterministic synthetic parameters (shapes match the nn.Sequential)."""
    ks = jax.random.split(key, 6)

    def lin(kw, fan_in, fan_out):
        bound = 1.0 / jnp.sqrt(jnp.float32(fan_in))
        return jax.random.uniform(kw, (fan_in, fan_out), jnp.float32, -bound, bound)

    w1 = lin(ks[0], LATENT_DIM, H1)
    b1 = jax.random.uniform(ks[1], (1, H1), jnp.float32, -0.1, 0.1)
    w2 = lin(ks[2], H1, H2)
    b2 = jax.random.uniform(ks[3], (1, H2), jnp.float32, -0.1, 0.1)
    gamma = jnp.ones((1, H2), jnp.float32)   # BatchNorm1d weight init
    beta = jnp.zeros((1, H2), jnp.float32)   # BatchNorm1d bias init
    w3 = lin(ks[4], H2, OUT)
    b3 = jax.random.uniform(ks[5], (1, OUT), jnp.float32, -0.1, 0.1)
    return (w1, b1, w2, b2, gamma, beta, w3, b3)


if __name__ == "__main__":
    key = jax.random.PRNGKey(0)
    k_z, k_p = jax.random.split(key)

    B = 8  # small demo batch; for throughput use B >= 128 (MXU M utilization)
    z = jax.random.normal(k_z, (B, LATENT_DIM), jnp.float32)
    params = init_params(k_p)

    fwd = jax.jit(generator_forward)

    # Default path: bf16 matmul operands (MXU-native), f32 accumulation/BN/tanh.
    img = jax.block_until_ready(fwd(z, prepare_params(params)))
    assert img.shape == (B, 1, 28, 28), img.shape
    assert img.dtype == jnp.float32

    img_ref = jax.block_until_ready(generator_reference(z, params))

    # Tight structural check with f32 matmul operands (exact module fidelity).
    img_f32 = jax.block_until_ready(
        fwd(z, prepare_params(params, matmul_dtype=jnp.float32)))
    err_f32 = float(jnp.max(jnp.abs(img_f32 - img_ref)))
    assert err_f32 < 5e-3, err_f32

    # Looser sanity check for the bf16 default (operand quantization only).
    err_bf16 = float(jnp.max(jnp.abs(img - img_ref)))
    assert err_bf16 < 1e-1, err_bf16

    print("KERNEL_OK")
</pallas_src>

<mosaic_0001>
module attributes {stable_mosaic.version = 11 : i64} {
  func.func @bn_stats_kernel(%arg0: i32, %arg1: memref<8x128xf32, #tpu.memory_space<vmem>>, %arg2: memref<128x128xbf16, #tpu.memory_space<vmem>>, %arg3: memref<1x128xf32, #tpu.memory_space<vmem>>, %arg4: memref<128x256xbf16, #tpu.memory_space<vmem>>, %arg5: memref<1x256xf32, #tpu.memory_space<vmem>>, %arg6: memref<1x256xf32, #tpu.memory_space<vmem>>) attributes {dimension_semantics = [#tpu.dimension_semantics<arbitrary>], iteration_bounds = array<i64: 1>, scalar_prefetch = 0 : i64, scratch_operands = 0 : i64, tpu.core_type = #tpu.core_type<tc>, window_params = [{transform_indices = @transform_0, window_bounds = array<i64: 8, 128>}, {pipeline_mode = #tpu.pipeline_mode<synchronous>, transform_indices = @transform_1, window_bounds = array<i64: 128, 128>}, {pipeline_mode = #tpu.pipeline_mode<synchronous>, transform_indices = @transform_2, window_bounds = array<i64: 1, 128>}, {pipeline_mode = #tpu.pipeline_mode<synchronous>, transform_indices = @transform_3, window_bounds = array<i64: 128, 256>}, {pipeline_mode = #tpu.pipeline_mode<synchronous>, transform_indices = @transform_4, window_bounds = array<i64: 1, 256>}, {pipeline_mode = #tpu.pipeline_mode<synchronous>, transform_indices = @transform_5, window_bounds = array<i64: 1, 256>}]} {
    %c0_i32 = arith.constant 0 : i32
    %0 = arith.cmpi eq, %arg0, %c0_i32 : i32
    %1 = arith.extui %0 : i1 to i32
    %c0_i32_0 = arith.constant 0 : i32
    %2 = arith.cmpi ne, %1, %c0_i32_0 : i32
    scf.if %2 {
      %cst_20 = arith.constant 0.000000e+00 : f32
      %26 = vector.broadcast %cst_20 : f32 to vector<1x256xf32>
      %c0_21 = arith.constant 0 : index
      %c0_22 = arith.constant 0 : index
      %27 = vector.load %arg5[%c0_21, %c0_22] : memref<1x256xf32, #tpu.memory_space<vmem>>, vector<1x256xf32>
      tpu.vector_store %arg5[%c0_21, %c0_22], %26 {strides = array<i32>} : memref<1x256xf32, #tpu.memory_space<vmem>>, vector<1x256xf32>,
      %cst_23 = arith.constant 0.000000e+00 : f32
      %28 = vector.broadcast %cst_23 : f32 to vector<1x256xf32>
      %c0_24 = arith.constant 0 : index
      %c0_25 = arith.constant 0 : index
      %29 = vector.load %arg6[%c0_24, %c0_25] : memref<1x256xf32, #tpu.memory_space<vmem>>, vector<1x256xf32>
      tpu.vector_store %arg6[%c0_24, %c0_25], %28 {strides = array<i32>} : memref<1x256xf32, #tpu.memory_space<vmem>>, vector<1x256xf32>,
    } else {
    }
    %c0 = arith.constant 0 : index
    %c0_1 = arith.constant 0 : index
    %3 = vector.load %arg1[%c0, %c0_1] : memref<8x128xf32, #tpu.memory_space<vmem>>, vector<8x128xf32>
    %4 = arith.truncf %3 : vector<8x128xf32> to vector<8x128xbf16>
    %c0_2 = arith.constant 0 : index
    %c0_3 = arith.constant 0 : index
    %5 = vector.load %arg2[%c0_2, %c0_3] : memref<128x128xbf16, #tpu.memory_space<vmem>>, vector<128x128xbf16>
    %cst = arith.constant dense<0.000000e+00> : vector<8x128xf32>
    %6 = tpu.matmul %4, %5, %cst {dimension_numbers = #tpu.dot_dimension_numbers<[1], [0], [0], [1], [0, 0, 1, 1], [], []>} : vector<8x128xbf16>, vector<128x128xbf16>, vector<8x128xf32> -> vector<8x128xf32>
    %c0_4 = arith.constant 0 : index
    %c0_5 = arith.constant 0 : index
    %7 = vector.load %arg3[%c0_4, %c0_5] : memref<1x128xf32, #tpu.memory_space<vmem>>, vector<1x128xf32>
    %8 = vector.broadcast %7 : vector<1x128xf32> to vector<8x128xf32>
    %9 = arith.addf %6, %8 : vector<8x128xf32>
    %cst_6 = arith.constant 0.000000e+00 : f32
    %10 = vector.broadcast %cst_6 : f32 to vector<8x128xf32>
    %11 = arith.maximumf %9, %10 : vector<8x128xf32>
    %12 = arith.truncf %11 : vector<8x128xf32> to vector<8x128xbf16>
    %c0_7 = arith.constant 0 : index
    %c0_8 = arith.constant 0 : index
    %13 = vector.load %arg4[%c0_7, %c0_8] : memref<128x256xbf16, #tpu.memory_space<vmem>>, vector<128x256xbf16>
    %cst_9 = arith.constant dense<0.000000e+00> : vector<8x256xf32>
    %14 = tpu.matmul %12, %13, %cst_9 {dimension_numbers = #tpu.dot_dimension_numbers<[1], [0], [0], [1], [0, 0, 1, 1], [], []>} : vector<8x128xbf16>, vector<128x256xbf16>, vector<8x256xf32> -> vector<8x256xf32>
    %c0_10 = arith.constant 0 : index
    %c0_11 = arith.constant 0 : index
    %15 = vector.load %arg5[%c0_10, %c0_11] : memref<1x256xf32, #tpu.memory_space<vmem>>, vector<1x256xf32>
    %cst_12 = arith.constant dense<0.000000e+00> : vector<256xf32>
    %16 = vector.multi_reduction <add>, %14, %cst_12 [0] : vector<8x256xf32> to vector<256xf32>
    %17 = vector.shape_cast %16 : vector<256xf32> to vector<1x256xf32>
    %18 = arith.addf %15, %17 : vector<1x256xf32>
    %c0_13 = arith.constant 0 : index
    %c0_14 = arith.constant 0 : index
    %19 = vector.load %arg5[%c0_13, %c0_14] : memref<1x256xf32, #tpu.memory_space<vmem>>, vector<1x256xf32>
    tpu.vector_store %arg5[%c0_13, %c0_14], %18 {strides = array<i32>} : memref<1x256xf32, #tpu.memory_space<vmem>>, vector<1x256xf32>,
    %c0_15 = arith.constant 0 : index
    %c0_16 = arith.constant 0 : index
    %20 = vector.load %arg6[%c0_15, %c0_16] : memref<1x256xf32, #tpu.memory_space<vmem>>, vector<1x256xf32>
    %21 = arith.mulf %14, %14 : vector<8x256xf32>
    %cst_17 = arith.constant dense<0.000000e+00> : vector<256xf32>
    %22 = vector.multi_reduction <add>, %21, %cst_17 [0] : vector<8x256xf32> to vector<256xf32>
    %23 = vector.shape_cast %22 : vector<256xf32> to vector<1x256xf32>
    %24 = arith.addf %20, %23 : vector<1x256xf32>
    %c0_18 = arith.constant 0 : index
    %c0_19 = arith.constant 0 : index
    %25 = vector.load %arg6[%c0_18, %c0_19] : memref<1x256xf32, #tpu.memory_space<vmem>>, vector<1x256xf32>
    tpu.vector_store %arg6[%c0_18, %c0_19], %24 {strides = array<i32>} : memref<1x256xf32, #tpu.memory_space<vmem>>, vector<1x256xf32>,
    return
  }
  func.func @transform_0(%arg0: i32) -> (i32, i32) {
    %c0_i32 = arith.constant 0 : i32
    %c0_i32_0 = arith.constant 0 : i32
    return %arg0, %c0_i32 : i32, i32
  }
  func.func @transform_1(%arg0: i32) -> (i32, i32) {
    %c0_i32 = arith.constant 0 : i32
    %c0_i32_0 = arith.constant 0 : i32
    %c0_i32_1 = arith.constant 0 : i32
    return %c0_i32, %c0_i32_0 : i32, i32
  }
  func.func @transform_2(%arg0: i32) -> (i32, i32) {
    %c0_i32 = arith.constant 0 : i32
    %c0_i32_0 = arith.constant 0 : i32
    %c0_i32_1 = arith.constant 0 : i32
    return %c0_i32, %c0_i32_0 : i32, i32
  }
  func.func @transform_3(%arg0: i32) -> (i32, i32) {
    %c0_i32 = arith.constant 0 : i32
    %c0_i32_0 = arith.constant 0 : i32
    %c0_i32_1 = arith.constant 0 : i32
    return %c0_i32, %c0_i32_0 : i32, i32
  }
  func.func @transform_4(%arg0: i32) -> (i32, i32) {
    %c0_i32 = arith.constant 0 : i32
    %c0_i32_0 = arith.constant 0 : i32
    %c0_i32_1 = arith.constant 0 : i32
    return %c0_i32, %c0_i32_0 : i32, i32
  }
  func.func @transform_5(%arg0: i32) -> (i32, i32) {
    %c0_i32 = arith.constant 0 : i32
    %c0_i32_0 = arith.constant 0 : i32
    %c0_i32_1 = arith.constant 0 : i32
    return %c0_i32, %c0_i32_0 : i32, i32
  }
}

module attributes {stable_mosaic.version = 11 : i64} {
  func.func @generator_kernel(%arg0: i32, %arg1: memref<8x128xf32, #tpu.memory_space<vmem>>, %arg2: memref<128x128xbf16, #tpu.memory_space<vmem>>, %arg3: memref<1x128xf32, #tpu.memory_space<vmem>>, %arg4: memref<128x256xbf16, #tpu.memory_space<vmem>>, %arg5: memref<1x256xf32, #tpu.memory_space<vmem>>, %arg6: memref<1x256xf32, #tpu.memory_space<vmem>>, %arg7: memref<1x256xf32, #tpu.memory_space<vmem>>, %arg8: memref<1x256xf32, #tpu.memory_space<vmem>>, %arg9: memref<256x896xbf16, #tpu.memory_space<vmem>>, %arg10: memref<1x896xf32, #tpu.memory_space<vmem>>, %arg11: memref<8x896xf32, #tpu.memory_space<vmem>>) attributes {dimension_semantics = [#tpu.dimension_semantics<parallel>], iteration_bounds = array<i64: 1>, scalar_prefetch = 0 : i64, scratch_operands = 0 : i64, tpu.core_type = #tpu.core_type<tc>, window_params = [{transform_indices = @transform_0, window_bounds = array<i64: 8, 128>}, {pipeline_mode = #tpu.pipeline_mode<synchronous>, transform_indices = @transform_1, window_bounds = array<i64: 128, 128>}, {pipeline_mode = #tpu.pipeline_mode<synchronous>, transform_indices = @transform_2, window_bounds = array<i64: 1, 128>}, {pipeline_mode = #tpu.pipeline_mode<synchronous>, transform_indices = @transform_3, window_bounds = array<i64: 128, 256>}, {pipeline_mode = #tpu.pipeline_mode<synchronous>, transform_indices = @transform_4, window_bounds = array<i64: 1, 256>}, {pipeline_mode = #tpu.pipeline_mode<synchronous>, transform_indices = @transform_5, window_bounds = array<i64: 1, 256>}, {pipeline_mode = #tpu.pipeline_mode<synchronous>, transform_indices = @transform_6, window_bounds = array<i64: 1, 256>}, {pipeline_mode = #tpu.pipeline_mode<synchronous>, transform_indices = @transform_7, window_bounds = array<i64: 1, 256>}, {pipeline_mode = #tpu.pipeline_mode<synchronous>, transform_indices = @transform_8, window_bounds = array<i64: 256, 896>}, {pipeline_mode = #tpu.pipeline_mode<synchronous>, transform_indices = @transform_9, window_bounds = array<i64: 1, 896>}, {transform_indices = @transform_10, window_bounds = array<i64: 8, 896>}]} {
    %c0 = arith.constant 0 : index
    %c0_0 = arith.constant 0 : index
    %0 = vector.load %arg1[%c0, %c0_0] : memref<8x128xf32, #tpu.memory_space<vmem>>, vector<8x128xf32>
    %1 = arith.truncf %0 : vector<8x128xf32> to vector<8x128xbf16>
    %c0_1 = arith.constant 0 : index
    %c0_2 = arith.constant 0 : index
    %2 = vector.load %arg2[%c0_1, %c0_2] : memref<128x128xbf16, #tpu.memory_space<vmem>>, vector<128x128xbf16>
    %cst = arith.constant dense<0.000000e+00> : vector<8x128xf32>
    %3 = tpu.matmul %1, %2, %cst {dimension_numbers = #tpu.dot_dimension_numbers<[1], [0], [0], [1], [0, 0, 1, 1], [], []>} : vector<8x128xbf16>, vector<128x128xbf16>, vector<8x128xf32> -> vector<8x128xf32>
    %c0_3 = arith.constant 0 : index
    %c0_4 = arith.constant 0 : index
    %4 = vector.load %arg3[%c0_3, %c0_4] : memref<1x128xf32, #tpu.memory_space<vmem>>, vector<1x128xf32>
    %5 = vector.broadcast %4 : vector<1x128xf32> to vector<8x128xf32>
    %6 = arith.addf %3, %5 : vector<8x128xf32>
    %cst_5 = arith.constant 0.000000e+00 : f32
    %7 = vector.broadcast %cst_5 : f32 to vector<8x128xf32>
    %8 = arith.maximumf %6, %7 : vector<8x128xf32>
    %9 = arith.truncf %8 : vector<8x128xf32> to vector<8x128xbf16>
    %c0_6 = arith.constant 0 : index
    %c0_7 = arith.constant 0 : index
    %10 = vector.load %arg4[%c0_6, %c0_7] : memref<128x256xbf16, #tpu.memory_space<vmem>>, vector<128x256xbf16>
    %cst_8 = arith.constant dense<0.000000e+00> : vector<8x256xf32>
    %11 = tpu.matmul %9, %10, %cst_8 {dimension_numbers = #tpu.dot_dimension_numbers<[1], [0], [0], [1], [0, 0, 1, 1], [], []>} : vector<8x128xbf16>, vector<128x256xbf16>, vector<8x256xf32> -> vector<8x256xf32>
    %c0_9 = arith.constant 0 : index
    %c0_10 = arith.constant 0 : index
    %12 = vector.load %arg5[%c0_9, %c0_10] : memref<1x256xf32, #tpu.memory_space<vmem>>, vector<1x256xf32>
    %cst_11 = arith.constant 1.250000e-01 : f32
    %13 = vector.broadcast %cst_11 : f32 to vector<1x256xf32>
    %14 = arith.mulf %12, %13 : vector<1x256xf32>
    %c0_12 = arith.constant 0 : index
    %c0_13 = arith.constant 0 : index
    %15 = vector.load %arg6[%c0_12, %c0_13] : memref<1x256xf32, #tpu.memory_space<vmem>>, vector<1x256xf32>
    %cst_14 = arith.constant 1.250000e-01 : f32
    %16 = vector.broadcast %cst_14 : f32 to vector<1x256xf32>
    %17 = arith.mulf %15, %16 : vector<1x256xf32>
    %18 = arith.mulf %14, %14 : vector<1x256xf32>
    %19 = arith.subf %17, %18 : vector<1x256xf32>
    %cst_15 = arith.constant 0.000000e+00 : f32
    %20 = vector.broadcast %cst_15 : f32 to vector<1x256xf32>
    %21 = arith.maximumf %19, %20 : vector<1x256xf32>
    %c0_16 = arith.constant 0 : index
    %c0_17 = arith.constant 0 : index
    %22 = vector.load %arg7[%c0_16, %c0_17] : memref<1x256xf32, #tpu.memory_space<vmem>>, vector<1x256xf32>
    %cst_18 = arith.constant 9.99999974E-6 : f32
    %23 = vector.broadcast %cst_18 : f32 to vector<1x256xf32>
    %24 = arith.addf %21, %23 : vector<1x256xf32>
    %25 = math.rsqrt %24 : vector<1x256xf32>
    %26 = arith.mulf %22, %25 : vector<1x256xf32>
    %c0_19 = arith.constant 0 : index
    %c0_20 = arith.constant 0 : index
    %27 = vector.load %arg8[%c0_19, %c0_20] : memref<1x256xf32, #tpu.memory_space<vmem>>, vector<1x256xf32>
    %28 = arith.mulf %14, %26 : vector<1x256xf32>
    %29 = arith.subf %27, %28 : vector<1x256xf32>
    %30 = vector.broadcast %26 : vector<1x256xf32> to vector<8x256xf32>
    %31 = arith.mulf %11, %30 : vector<8x256xf32>
    %32 = vector.broadcast %29 : vector<1x256xf32> to vector<8x256xf32>
    %33 = arith.addf %31, %32 : vector<8x256xf32>
    %cst_21 = arith.constant 0.000000e+00 : f32
    %34 = vector.broadcast %cst_21 : f32 to vector<8x256xf32>
    %35 = arith.maximumf %33, %34 : vector<8x256xf32>
    %36 = arith.truncf %35 : vector<8x256xf32> to vector<8x256xbf16>
    %c0_22 = arith.constant 0 : index
    %c0_23 = arith.constant 0 : index
    %37 = vector.load %arg9[%c0_22, %c0_23] : memref<256x896xbf16, #tpu.memory_space<vmem>>, vector<256x896xbf16>
    %cst_24 = arith.constant dense<0.000000e+00> : vector<8x896xf32>
    %38 = tpu.matmul %36, %37, %cst_24 {dimension_numbers = #tpu.dot_dimension_numbers<[1], [0], [0], [1], [0, 0, 1, 1], [], []>} : vector<8x256xbf16>, vector<256x896xbf16>, vector<8x896xf32> -> vector<8x896xf32>
    %c0_25 = arith.constant 0 : index
    %c0_26 = arith.constant 0 : index
    %39 = vector.load %arg10[%c0_25, %c0_26] : memref<1x896xf32, #tpu.memory_space<vmem>>, vector<1x896xf32>
    %40 = vector.broadcast %39 : vector<1x896xf32> to vector<8x896xf32>
    %41 = arith.addf %38, %40 : vector<8x896xf32>
    %42 = math.tanh %41 : vector<8x896xf32>
    %c0_27 = arith.constant 0 : index
    %c0_28 = arith.constant 0 : index
    %43 = vector.load %arg11[%c0_27, %c0_28] : memref<8x896xf32, #tpu.memory_space<vmem>>, vector<8x896xf32>
    tpu.vector_store %arg11[%c0_27, %c0_28], %42 {strides = array<i32>} : memref<8x896xf32, #tpu.memory_space<vmem>>, vector<8x896xf32>,
    return
  }
  func.func @transform_0(%arg0: i32) -> (i32, i32) {
    %c0_i32 = arith.constant 0 : i32
    %c0_i32_0 = arith.constant 0 : i32
    return %arg0, %c0_i32 : i32, i32
  }
  func.func @transform_1(%arg0: i32) -> (i32, i32) {
    %c0_i32 = arith.constant 0 : i32
    %c0_i32_0 = arith.constant 0 : i32
    %c0_i32_1 = arith.constant 0 : i32
    return %c0_i32, %c0_i32_0 : i32, i32
  }
  func.func @transform_2(%arg0: i32) -> (i32, i32) {
    %c0_i32 = arith.constant 0 : i32
    %c0_i32_0 = arith.constant 0 : i32
    %c0_i32_1 = arith.constant 0 : i32
    return %c0_i32, %c0_i32_0 : i32, i32
  }
  func.func @transform_3(%arg0: i32) -> (i32, i32) {
    %c0_i32 = arith.constant 0 : i32
    %c0_i32_0 = arith.constant 0 : i32
    %c0_i32_1 = arith.constant 0 : i32
    return %c0_i32, %c0_i32_0 : i32, i32
  }
  func.func @transform_4(%arg0: i32) -> (i32, i32) {
    %c0_i32 = arith.constant 0 : i32
    %c0_i32_0 = arith.constant 0 : i32
    %c0_i32_1 = arith.constant 0 : i32
    return %c0_i32, %c0_i32_0 : i32, i32
  }
  func.func @transform_5(%arg0: i32) -> (i32, i32) {
    %c0_i32 = arith.constant 0 : i32
    %c0_i32_0 = arith.constant 0 : i32
    %c0_i32_1 = arith.constant 0 : i32
    return %c0_i32, %c0_i32_0 : i32, i32
  }
  func.func @transform_6(%arg0: i32) -> (i32, i32) {
    %c0_i32 = arith.constant 0 : i32
    %c0_i32_0 = arith.constant 0 : i32
    %c0_i32_1 = arith.constant 0 : i32
    return %c0_i32, %c0_i32_0 : i32, i32
  }
  func.func @transform_7(%arg0: i32) -> (i32, i32) {
    %c0_i32 = arith.constant 0 : i32
    %c0_i32_0 = arith.constant 0 : i32
    %c0_i32_1 = arith.constant 0 : i32
    return %c0_i32, %c0_i32_0 : i32, i32
  }
  func.func @transform_8(%arg0: i32) -> (i32, i32) {
    %c0_i32 = arith.constant 0 : i32
    %c0_i32_0 = arith.constant 0 : i32
    %c0_i32_1 = arith.constant 0 : i32
    return %c0_i32, %c0_i32_0 : i32, i32
  }
  func.func @transform_9(%arg0: i32) -> (i32, i32) {
    %c0_i32 = arith.constant 0 : i32
    %c0_i32_0 = arith.constant 0 : i32
    %c0_i32_1 = arith.constant 0 : i32
    return %c0_i32, %c0_i32_0 : i32, i32
  }
  func.func @transform_10(%arg0: i32) -> (i32, i32) {
    %c0_i32 = arith.constant 0 : i32
    %c0_i32_0 = arith.constant 0 : i32
    return %arg0, %c0_i32 : i32, i32
  }
}

</mosaic_0001>

<llo_original>
// kernel: generator_forward.2
$region0: #{generator_forward.2}
  #allocation0 [shape = 'u32[]', space=smem, size = 0x4, offset = 0x4, fixed_abs, tag = 'smem constant byte address 0x4 - core index']
  #allocation1 [shape = 'u32[144,128]{1,0:T(1,128)}', space=vmem, size = 0x12000, scoped, tag = 'internal scratch']
  %s0 = inlined_call_operand.vmem [shape: f32[8,128], index: 0, kind: input, shape index: {}]
  %s1 = inlined_call_operand.hbm [shape: bf16[128,128], index: 1, kind: input, shape index: {}]
  %s2 = inlined_call_operand.hbm [shape: f32[1,128], index: 2, kind: input, shape index: {}]
  %s3 = inlined_call_operand.hbm [shape: bf16[128,256], index: 3, kind: input, shape index: {}]
  %s4 = inlined_call_operand.vmem [shape: f32[1,256], index: 4, kind: output, shape index: {0}]
  %s5 = inlined_call_operand.vmem [shape: f32[1,256], index: 5, kind: output, shape index: {1}]
  %6 = xla_tuple %s4, %s5
  %s7 = sld [smem:[#allocation0]]
  $region50: #{generator_forward.2} parent=0
    _
  %s9 = ssub.s32 1, %s7
  %s10 = scalar_select 0, %s9, %s7
  $region1: #{generator_forward.2} parent=0
    #allocation2 [shape = 'u8[32768]{0}', space=vmem, size = 0x8000, scoped, tag = 'input window, operand 1, single buffered']
    #allocation3 [shape = 's32[1]{0}', space=sflag, size = 0x4, scoped, tag = 'scoped memory for generator_forward.2']
    #allocation4 [shape = 'u8[512]{0}', space=vmem, size = 0x400, scoped, tag = 'input window, operand 2, single buffered']
    #allocation5 [shape = 's32[1]{0}', space=sflag, size = 0x4, scoped, tag = 'scoped memory for generator_forward.2']
    #allocation6 [shape = 'u8[65536]{0}', space=vmem, size = 0x10000, scoped, tag = 'input window, operand 3, single buffered']
    %11 = vsyncpa [#allocation3], 0
    %12 = vsyncpa [#allocation5], 0
    // Predicated region
    $region2: #{generator_forward.2} parent=1 // pred_check
      _
    $region3: #{generator_forward.2} parent=1 // pred_check_branch
      %14 = sbr.rel (0) target = $region5
    $region4: #{generator_forward.2} parent=1 // pred_region
      _
    $region5: #{generator_forward.2} parent=1 // pred_fallthru
      _
    // Predicated region
    $region6: #{generator_forward.2} parent=1 // pred_check
      _
    $region7: #{generator_forward.2} parent=1 // pred_check_branch
      %16 = sbr.rel (0) target = $region9
    $region8: #{generator_forward.2} parent=1 // pred_region
      %s18 = ssub.s32 1024, 1024
      %19 = vsyncadd [#allocation3], %s18
      %s20 = sshll.u32 [#allocation2], 4
      %s21 = int_to_ptr.vmem [resolvable:$true] %s20
      %26 = dma.hbm_to_vmem [thread:$0]  %s1, 1024, %s21, [#allocation3], 64, 64, 4
    $region9: #{generator_forward.2} parent=1 // pred_fallthru
      _
    // Predicated region
    $region10: #{generator_forward.2} parent=1 // pred_check
      _
    $region11: #{generator_forward.2} parent=1 // pred_check_branch
      %28 = sbr.rel (0) target = $region13
    $region12: #{generator_forward.2} parent=1 // pred_region
      %s30 = ssub.s32 16, 16
      %31 = vsyncadd [#allocation5], %s30
      %s33 = sshll.u32 [#allocation4], 4
      %s34 = int_to_ptr.vmem [resolvable:$true] %s33
      %36 = dma.hbm_to_vmem [thread:$0]  %s2, 16, %s34, [#allocation5]
    $region13: #{generator_forward.2} parent=1 // pred_fallthru
      _
    // Predicated region
    $region14: #{generator_forward.2} parent=1 // pred_check
      _
    $region15: #{generator_forward.2} parent=1 // pred_check_branch
      %38 = sbr.rel (0) target = $region17
    $region16: #{generator_forward.2} parent=1 // pred_region
      %s40 = ssub.s32 2048, 2048
      %41 = vsyncadd [#allocation5], %s40
      %s42 = sshll.u32 [#allocation6], 4
      %s43 = int_to_ptr.vmem [resolvable:$true] %s42
      %48 = dma.hbm_to_vmem [thread:$0]  %s3, 2048, %s43, [#allocation5], 128, 128, 8
    $region17: #{generator_forward.2} parent=1 // pred_fallthru
      _
    // Predicated region
    $region18: #{generator_forward.2} parent=1 // pred_check
      _
    $region19: #{generator_forward.2} parent=1 // pred_check_branch
      %50 = sbr.rel (0) target = $region21
    $region20: #{generator_forward.2} parent=1 // pred_region
      %51 = dma.done [#allocation3], 1024
    $region21: #{generator_forward.2} parent=1 // pred_fallthru
      _
    // Predicated region
    $region22: #{generator_forward.2} parent=1 // pred_check
      _
    $region23: #{generator_forward.2} parent=1 // pred_check_branch
      %53 = sbr.rel (0) target = $region25
    $region24: #{generator_forward.2} parent=1 // pred_region
      %54 = dma.done [#allocation5], 16
    $region25: #{generator_forward.2} parent=1 // pred_fallthru
      _
    // Predicated region
    $region26: #{generator_forward.2} parent=1 // pred_check
      _
    $region27: #{generator_forward.2} parent=1 // pred_check_branch
      %56 = sbr.rel (0) target = $region29
    $region28: #{generator_forward.2} parent=1 // pred_region
      %57 = dma.done [#allocation5], 2048
    $region29: #{generator_forward.2} parent=1 // pred_fallthru
      _
    %p59 = scmp.eq.s32.totalorder 0, 0
    // Predicated region
    $region30: #{generator_forward.2} parent=1 // pred_check
      %p60 = pneg %p59
    $region31: #{generator_forward.2} parent=1 // pred_check_branch
      %62 = sbr.rel (%p60) target = $region33
    $region32: #{generator_forward.2} parent=1 // pred_region
      %v63 = vlaneseq
      %vm64 = vcmp.ge.s32.totalorder %v63, 0
      %vm65 = vcmp.lt.s32.totalorder %v63, 256
      %vm66 = vmand %vm64, %vm65
      %67 = vst.msk [vmem:[%s4] sm:$0x3] %vm66, 0.0
      %68 = vst.msk [vmem:[%s5] sm:$0x3] %vm66, 0.0
    $region33: #{generator_forward.2} parent=1 // pred_fallthru
      _
    %v69 = vld [vmem:[%s0] sm:$0xff]
    %v70 = vpack.c.bf16 %v69, %v69
    %v71 = vld [vmem:[#allocation2] sm:$0xf]
    %v72 = vld [vmem:[#allocation2 + $0x4] sm:$0xf]
    %v73 = vld [vmem:[#allocation2 + $0x8] sm:$0xf]
    %v74 = vld [vmem:[#allocation2 + $0xc] sm:$0xf]
    %v75 = vld [vmem:[#allocation2 + $0x10] sm:$0xf]
    %v76 = vld [vmem:[#allocation2 + $0x14] sm:$0xf]
    %v77 = vld [vmem:[#allocation2 + $0x18] sm:$0xf]
    %v78 = vld [vmem:[#allocation2 + $0x1c] sm:$0xf]
    %v79 = vld [vmem:[#allocation2 + $0x20] sm:$0xf]
    %v80 = vld [vmem:[#allocation2 + $0x24] sm:$0xf]
    %v81 = vld [vmem:[#allocation2 + $0x28] sm:$0xf]
    %v82 = vld [vmem:[#allocation2 + $0x2c] sm:$0xf]
    %v83 = vld [vmem:[#allocation2 + $0x30] sm:$0xf]
    %v84 = vld [vmem:[#allocation2 + $0x34] sm:$0xf]
    %v85 = vld [vmem:[#allocation2 + $0x38] sm:$0xf]
    %v86 = vld [vmem:[#allocation2 + $0x3c] sm:$0xf]
    %v87 = vld [vmem:[#allocation4] sm:$0x1]
    %v89 = vlaneseq
    %v90 = vshrl.u32 %v89, 7
    %v91 = vsub.s32 0, %v90
    %v92 = vrot.slane %v87, %v91
    %v110 = vunpack.c.l.b16 %v71
    %v111 = vunpack.c.l.b16 %v72
    %v112 = vunpack.c.l.b16 %v73
    %v113 = vunpack.c.l.b16 %v74
    %v114 = vunpack.c.l.b16 %v75
    %v115 = vunpack.c.l.b16 %v76
    %v116 = vunpack.c.l.b16 %v77
    %v117 = vunpack.c.l.b16 %v78
    %v118 = vunpack.c.l.b16 %v79
    %v119 = vunpack.c.l.b16 %v80
    %v120 = vunpack.c.l.b16 %v81
    %v121 = vunpack.c.l.b16 %v82
    %v122 = vunpack.c.l.b16 %v83
    %v123 = vunpack.c.l.b16 %v84
    %v124 = vunpack.c.l.b16 %v85
    %v125 = vunpack.c.l.b16 %v86
    %v126 = vpack.c.b16 %v111, %v110
    %v127 = vpack.c.b16 %v113, %v112
    %v128 = vpack.c.b16 %v115, %v114
    %v129 = vpack.c.b16 %v117, %v116
    %v130 = vpack.c.b16 %v119, %v118
    %v131 = vpack.c.b16 %v121, %v120
    %v132 = vpack.c.b16 %v123, %v122
    %v133 = vpack.c.b16 %v125, %v124
    %142 = vmatprep.subr.bf16.mxu0 0
    %143 = vmatpush1.bf16.msra.mxu0 %v126
    %144 = vmatprep.subr.bf16.mxu0 0
    %145 = vmatpush1.bf16.msra.mxu0 %v127
    %146 = vmatprep.subr.bf16.mxu0 0
    %147 = vmatpush1.bf16.msra.mxu0 %v128
    %148 = vmatprep.subr.bf16.mxu0 0
    %149 = vmatpush1.bf16.msra.mxu0 %v129
    %150 = vmatprep.subr.bf16.mxu0 0
    %151 = vmatpush1.bf16.msra.mxu0 %v130
    %152 = vmatprep.subr.bf16.mxu0 0
    %153 = vmatpush1.bf16.msra.mxu0 %v131
    %154 = vmatprep.subr.bf16.mxu0 0
    %155 = vmatpush1.bf16.msra.mxu0 %v132
    %156 = vmatprep.subr.bf16.mxu0 0
    %157 = vmatpush1.bf16.msra.mxu0 %v133
    %158 = vmatprep.subr.bf16.mxu0 0
    %159 = vmatpush1.bf16.msra.mxu0 0
    %160 = vmatprep.subr.bf16.mxu0 0
    %161 = vmatpush1.bf16.msra.mxu0 0
    %162 = vmatprep.subr.bf16.mxu0 0
    %163 = vmatpush1.bf16.msra.mxu0 0
    %164 = vmatprep.subr.bf16.mxu0 0
    %165 = vmatpush1.bf16.msra.mxu0 0
    %166 = vmatprep.subr.bf16.mxu0 0
    %167 = vmatpush1.bf16.msra.mxu0 0
    %168 = vmatprep.subr.bf16.mxu0 0
    %169 = vmatpush1.bf16.msra.mxu0 0
    %170 = vmatprep.subr.bf16.mxu0 0
    %171 = vmatpush1.bf16.msra.mxu0 0
    %172 = vmatprep.subr.bf16.mxu0 0
    %173 = vmatpush1.bf16.msra.mxu0 0
    %174 = vmatprep.mubr.bf16.mxu0 0
    %175 = vmatmul.mubr.bf16.gmra.mrb[0].mxu0 %v70
    %v176 = vpop.f32.mrb[0].mxu0
    %v177 = vadd.f32 %v92, %v176
    %v178 = vpop.f32.mrb[0].mxu0
    %v179 = vpop.f32.mrb[0].mxu0
    %v180 = vpop.f32.mrb[0].mxu0
    %181 = vdwg.mxu0
    %v182 = vmax.f32 %v177, 0.0
    %v183 = vpack.c.bf16 %v182, %v182
    %v184 = vld [vmem:[#allocation6] sm:$0xff]
    %v185 = vld [vmem:[#allocation6 + $0x8] sm:$0xff]
    %v186 = vld [vmem:[#allocation6 + $0x10] sm:$0xff]
    %v187 = vld [vmem:[#allocation6 + $0x18] sm:$0xff]
    %v188 = vld [vmem:[#allocation6 + $0x20] sm:$0xff]
    %v189 = vld [vmem:[#allocation6 + $0x28] sm:$0xff]
    %v190 = vld [vmem:[#allocation6 + $0x30] sm:$0xff]
    %v191 = vld [vmem:[#allocation6 + $0x38] sm:$0xff]
    %v192 = vld [vmem:[#allocation6 + $0x40] sm:$0xff]
    %v193 = vld [vmem:[#allocation6 + $0x48] sm:$0xff]
    %v194 = vld [vmem:[#allocation6 + $0x50] sm:$0xff]
    %v195 = vld [vmem:[#allocation6 + $0x58] sm:$0xff]
    %v196 = vld [vmem:[#allocation6 + $0x60] sm:$0xff]
    %v197 = vld [vmem:[#allocation6 + $0x68] sm:$0xff]
    %v198 = vld [vmem:[#allocation6 + $0x70] sm:$0xff]
    %v199 = vld [vmem:[#allocation6 + $0x78] sm:$0xff]
    %v216 = vunpack.c.l.b16 %v184
    %v217 = vunpack.c.h.b16 %v184
    %v218 = vunpack.c.l.b16 %v185
    %v219 = vunpack.c.h.b16 %v185
    %v220 = vunpack.c.l.b16 %v186
    %v221 = vunpack.c.h.b16 %v186
    %v222 = vunpack.c.l.b16 %v187
    %v223 = vunpack.c.h.b16 %v187
    %v224 = vunpack.c.l.b16 %v188
    %v225 = vunpack.c.h.b16 %v188
    %v226 = vunpack.c.l.b16 %v189
    %v227 = vunpack.c.h.b16 %v189
    %v228 = vunpack.c.l.b16 %v190
    %v229 = vunpack.c.h.b16 %v190
    %v230 = vunpack.c.l.b16 %v191
    %v231 = vunpack.c.h.b16 %v191
    %v232 = vunpack.c.l.b16 %v192
    %v233 = vunpack.c.h.b16 %v192
    %v234 = vunpack.c.l.b16 %v193
    %v235 = vunpack.c.h.b16 %v193
    %v236 = vunpack.c.l.b16 %v194
    %v237 = vunpack.c.h.b16 %v194
    %v238 = vunpack.c.l.b16 %v195
    %v239 = vunpack.c.h.b16 %v195
    %v240 = vunpack.c.l.b16 %v196
    %v241 = vunpack.c.h.b16 %v196
    %v242 = vunpack.c.l.b16 %v197
    %v243 = vunpack.c.h.b16 %v197
    %v244 = vunpack.c.l.b16 %v198
    %v245 = vunpack.c.h.b16 %v198
    %v246 = vunpack.c.l.b16 %v199
    %v247 = vunpack.c.h.b16 %v199
    %v248 = vpack.c.b16 %v218, %v216
    %v249 = vpack.c.b16 %v219, %v217
    %v250 = vpack.c.b16 %v222, %v220
    %v251 = vpack.c.b16 %v223, %v221
    %v252 = vpack.c.b16 %v226, %v224
    %v253 = vpack.c.b16 %v227, %v225
    %v254 = vpack.c.b16 %v230, %v228
    %v255 = vpack.c.b16 %v231, %v229
    %v256 = vpack.c.b16 %v234, %v232
    %v257 = vpack.c.b16 %v235, %v233
    %v258 = vpack.c.b16 %v238, %v236
    %v259 = vpack.c.b16 %v239, %v237
    %v260 = vpack.c.b16 %v242, %v240
    %v261 = vpack.c.b16 %v243, %v241
    %v262 = vpack.c.b16 %v246, %v244
    %v263 = vpack.c.b16 %v247, %v245
    %280 = vmatprep.subr.bf16.mxu0 %v249
    %281 = vmatpush1.bf16.msra.mxu0 %v248
    %282 = vmatprep.subr.bf16.mxu0 %v251
    %283 = vmatpush1.bf16.msra.mxu0 %v250
    %284 = vmatprep.subr.bf16.mxu0 %v253
    %285 = vmatpush1.bf16.msra.mxu0 %v252
    %286 = vmatprep.subr.bf16.mxu0 %v255
    %287 = vmatpush1.bf16.msra.mxu0 %v254
    %288 = vmatprep.subr.bf16.mxu0 %v257
    %289 = vmatpush1.bf16.msra.mxu0 %v256
    %290 = vmatprep.subr.bf16.mxu0 %v259
    %291 = vmatpush1.bf16.msra.mxu0 %v258
    %292 = vmatprep.subr.bf16.mxu0 %v261
    %293 = vmatpush1.bf16.msra.mxu0 %v260
    %294 = vmatprep.subr.bf16.mxu0 %v263
    %295 = vmatpush1.bf16.msra.mxu0 %v262
    %296 = vmatprep.subr.bf16.mxu0 0
    %297 = vmatpush1.bf16.msra.mxu0 0
    %298 = vmatprep.subr.bf16.mxu0 0
    %299 = vmatpush1.bf16.msra.mxu0 0
    %300 = vmatprep.subr.bf16.mxu0 0
    %301 = vmatpush1.bf16.msra.mxu0 0
    %302 = vmatprep.subr.bf16.mxu0 0
    %303 = vmatpush1.bf16.msra.mxu0 0
    %304 = vmatprep.subr.bf16.mxu0 0
    %305 = vmatpush1.bf16.msra.mxu0 0
    %306 = vmatprep.subr.bf16.mxu0 0
    %307 = vmatpush1.bf16.msra.mxu0 0
    %308 = vmatprep.subr.bf16.mxu0 0
    %309 = vmatpush1.bf16.msra.mxu0 0
    %310 = vmatprep.subr.bf16.mxu0 0
    %311 = vmatpush1.bf16.msra.mxu0 0
    %312 = vmatprep.mubr.bf16.mxu0 0
    %313 = vmatmul.mubr.bf16.gmra.mrb[0].mxu0 %v183
    %v314 = vpop.f32.mrb[0].mxu0
    %v315 = vadd.f32 0.0, %v314
    %v316 = vpop.f32.mrb[0].mxu0
    %v317 = vadd.f32 0.0, %v316
    %v318 = vpop.f32.mrb[0].mxu0
    %v319 = vpop.f32.mrb[0].mxu0
    %320 = vdwg.mxu0
    %v321 = vld [vmem:[%s4] sm:$0x3]
    %v322 = vrot.slane %v315, 4
    %v323 = vadd.f32 %v315, %v322
    %v324 = vrot.slane %v323, 2
    %v325 = vadd.f32 %v323, %v324
    %v326 = vrot.slane %v325, 1
    %v327 = vadd.f32 %v325, %v326
    %v328 = vrot.slane %v317, 4
    %v329 = vadd.f32 %v317, %v328
    %v330 = vrot.slane %v329, 2
    %v331 = vadd.f32 %v329, %v330
    %v332 = vrot.slane %v331, 1
    %v333 = vadd.f32 %v331, %v332
    %v336 = vcombine.low %v327, %v333
    %v338 = vunpack.c.l.s4 1966171168
    %v339 = vunpack.c.0.s8 %v338
    %v340 = vlaneseq
    %v341 = vshrl.u32 %v340, 7
    %v342 = vsub.s32 %v339, %v341
    %v343 = vrot.slane %v336, %v342
    %v345 = vunpack.c.l.s4 1966171168
    %v346 = vunpack.c.0.s8 %v345
    %v347 = vlaneseq
    %v348 = vshrl.u32 %v347, 7
    %v349 = vsub.s32 %v346, %v348
    %v350 = vrot.slane %v343, %v349
    %v352 = vadd.f32 %v321, %v350
    %v353 = vlaneseq
    %vm354 = vcmp.ge.s32.totalorder %v353, 0
    %vm355 = vcmp.lt.s32.totalorder %v353, 256
    %vm356 = vmand %vm354, %vm355
    %357 = vst.msk [vmem:[%s4] sm:$0x3] %vm356, %v352
    %v358 = vld [vmem:[%s5] sm:$0x3]
    %v359 = vmul.f32 %v315, %v315
    %v360 = vmul.f32 %v317, %v317
    %v361 = vrot.slane %v359, 4
    %v362 = vadd.f32 %v359, %v361
    %v363 = vrot.slane %v362, 2
    %v364 = vadd.f32 %v362, %v363
    %v365 = vrot.slane %v364, 1
    %v366 = vadd.f32 %v364, %v365
    %v367 = vrot.slane %v360, 4
    %v368 = vadd.f32 %v360, %v367
    %v369 = vrot.slane %v368, 2
    %v370 = vadd.f32 %v368, %v369
    %v371 = vrot.slane %v370, 1
    %v372 = vadd.f32 %v370, %v371
    %v375 = vcombine.low %v366, %v372
    %v377 = vunpack.c.l.s4 1966171168
    %v378 = vunpack.c.0.s8 %v377
    %v379 = vlaneseq
    %v380 = vshrl.u32 %v379, 7
    %v381 = vsub.s32 %v378, %v380
    %v382 = vrot.slane %v375, %v381
    %v384 = vunpack.c.l.s4 1966171168
    %v385 = vunpack.c.0.s8 %v384
    %v386 = vlaneseq
    %v387 = vshrl.u32 %v386, 7
    %v388 = vsub.s32 %v385, %v387
    %v389 = vrot.slane %v382, %v388
    %v391 = vadd.f32 %v358, %v389
    %392 = vst.msk [vmem:[%s5] sm:$0x3] %vm356, %v391
    // Predicated region
    $region34: #{generator_forward.2} parent=1 // pred_check
      _
    $region35: #{generator_forward.2} parent=1 // pred_check_branch
      %394 = sbr.rel (0) target = $region37
    $region36: #{generator_forward.2} parent=1 // pred_region
      _
    $region37: #{generator_forward.2} parent=1 // pred_fallthru
      _
    // Predicated region
    $region38: #{generator_forward.2} parent=1 // pred_check
      _
    $region39: #{generator_forward.2} parent=1 // pred_check_branch
      %396 = sbr.rel (0) target = $region41
    $region40: #{generator_forward.2} parent=1 // pred_region
      _
    $region41: #{generator_forward.2} parent=1 // pred_fallthru
      _
    // Predicated region
    $region42: #{generator_forward.2} parent=1 // pred_check
      _
    $region43: #{generator_forward.2} parent=1 // pred_check_branch
      %398 = sbr.rel (0) target = $region45
    $region44: #{generator_forward.2} parent=1 // pred_region
      _
    $region45: #{generator_forward.2} parent=1 // pred_fallthru
      _
    // Predicated region
    $region46: #{generator_forward.2} parent=1 // pred_check
      _
    $region47: #{generator_forward.2} parent=1 // pred_check_branch
      %400 = sbr.rel (0) target = $region49
    $region48: #{generator_forward.2} parent=1 // pred_region
      _
    $region49: #{generator_forward.2} parent=1 // pred_fallthru
      _
    %401 = vsyncpa [#allocation3], 1
    %402 = vsyncpa [#allocation5], 1

// kernel: generator_forward.3
$region0: #{generator_forward.3}
  #allocation0 [shape = 'u32[]', space=smem, size = 0x4, offset = 0x4, fixed_abs, tag = 'smem constant byte address 0x4 - core index']
  #allocation1 [shape = 'u32[144,128]{1,0:T(1,128)}', space=vmem, size = 0x12000, scoped, tag = 'internal scratch']
  %s0 = inlined_call_operand.vmem [shape: f32[8,128], index: 0, kind: input, shape index: {}]
  %s1 = inlined_call_operand.vmem [shape: bf16[128,128], index: 1, kind: input, shape index: {}]
  %s2 = inlined_call_operand.vmem [shape: f32[1,128], index: 2, kind: input, shape index: {}]
  %s3 = inlined_call_operand.vmem [shape: bf16[128,256], index: 3, kind: input, shape index: {}]
  %s4 = inlined_call_operand.vmem [shape: f32[1,256], index: 4, kind: input, shape index: {}]
  %s5 = inlined_call_operand.vmem [shape: f32[1,256], index: 5, kind: input, shape index: {}]
  %s6 = inlined_call_operand.vmem [shape: f32[1,256], index: 6, kind: input, shape index: {}]
  %s7 = inlined_call_operand.vmem [shape: f32[1,256], index: 7, kind: input, shape index: {}]
  %s8 = inlined_call_operand.hbm [shape: bf16[256,896], index: 8, kind: input, shape index: {}]
  %s9 = inlined_call_operand.vmem [shape: f32[1,896], index: 9, kind: input, shape index: {}]
  %s10 = inlined_call_operand.vmem [shape: f32[8,896], index: 10, kind: output, shape index: {}]
  %s11 = sld [smem:[#allocation0]]
  $region54: #{generator_forward.3} parent=0
    _
  %s13 = ssub.s32 1, %s11
  %s14 = scalar_select 0, %s13, %s11
  $region1: #{generator_forward.3} parent=0
    #allocation2 [shape = 'u8[458752]{0}', space=vmem, size = 0x70000, scoped, tag = 'input window, operand 8, single buffered']
    #allocation3 [shape = 's32[1]{0}', space=sflag, size = 0x4, scoped, tag = 'scoped memory for generator_forward.3']
    %15 = vsyncpa [#allocation3], 0
    // Predicated region
    $region2: #{generator_forward.3} parent=1 // pred_check
      _
    $region3: #{generator_forward.3} parent=1 // pred_check_branch
      %17 = sbr.rel (0) target = $region5
    $region4: #{generator_forward.3} parent=1 // pred_region
      _
    $region5: #{generator_forward.3} parent=1 // pred_fallthru
      _
    // Predicated region
    $region6: #{generator_forward.3} parent=1 // pred_check
      _
    $region7: #{generator_forward.3} parent=1 // pred_check_branch
      %19 = sbr.rel (0) target = $region9
    $region8: #{generator_forward.3} parent=1 // pred_region
      _
    $region9: #{generator_forward.3} parent=1 // pred_fallthru
      _
    // Predicated region
    $region10: #{generator_forward.3} parent=1 // pred_check
      _
    $region11: #{generator_forward.3} parent=1 // pred_check_branch
      %21 = sbr.rel (0) target = $region13
    $region12: #{generator_forward.3} parent=1 // pred_region
      _
    $region13: #{generator_forward.3} parent=1 // pred_fallthru
      _
    // Predicated region
    $region14: #{generator_forward.3} parent=1 // pred_check
      _
    $region15: #{generator_forward.3} parent=1 // pred_check_branch
      %23 = sbr.rel (0) target = $region17
    $region16: #{generator_forward.3} parent=1 // pred_region
      _
    $region17: #{generator_forward.3} parent=1 // pred_fallthru
      _
    // Predicated region
    $region18: #{generator_forward.3} parent=1 // pred_check
      _
    $region19: #{generator_forward.3} parent=1 // pred_check_branch
      %25 = sbr.rel (0) target = $region21
    $region20: #{generator_forward.3} parent=1 // pred_region
      _
    $region21: #{generator_forward.3} parent=1 // pred_fallthru
      _
    // Predicated region
    $region22: #{generator_forward.3} parent=1 // pred_check
      _
    $region23: #{generator_forward.3} parent=1 // pred_check_branch
      %27 = sbr.rel (0) target = $region25
    $region24: #{generator_forward.3} parent=1 // pred_region
      _
    $region25: #{generator_forward.3} parent=1 // pred_fallthru
      _
    // Predicated region
    $region26: #{generator_forward.3} parent=1 // pred_check
      _
    $region27: #{generator_forward.3} parent=1 // pred_check_branch
      %29 = sbr.rel (0) target = $region29
    $region28: #{generator_forward.3} parent=1 // pred_region
      _
    $region29: #{generator_forward.3} parent=1 // pred_fallthru
      _
    // Predicated region
    $region30: #{generator_forward.3} parent=1 // pred_check
      _
    $region31: #{generator_forward.3} parent=1 // pred_check_branch
      %31 = sbr.rel (0) target = $region33
    $region32: #{generator_forward.3} parent=1 // pred_region
      _
    $region33: #{generator_forward.3} parent=1 // pred_fallthru
      _
    // Predicated region
    $region34: #{generator_forward.3} parent=1 // pred_check
      _
    $region35: #{generator_forward.3} parent=1 // pred_check_branch
      %33 = sbr.rel (0) target = $region37
    $region36: #{generator_forward.3} parent=1 // pred_region
      %s35 = ssub.s32 14336, 14336
      %36 = vsyncadd [#allocation3], %s35
      %s37 = sshll.u32 [#allocation2], 4
      %s38 = int_to_ptr.vmem [resolvable:$true] %s37
      %43 = dma.hbm_to_vmem [thread:$0]  %s8, 14336, %s38, [#allocation3], 448, 448, 28
    $region37: #{generator_forward.3} parent=1 // pred_fallthru
      _
    // Predicated region
    $region38: #{generator_forward.3} parent=1 // pred_check
      _
    $region39: #{generator_forward.3} parent=1 // pred_check_branch
      %45 = sbr.rel (0) target = $region41
    $region40: #{generator_forward.3} parent=1 // pred_region
      _
    $region41: #{generator_forward.3} parent=1 // pred_fallthru
      _
    // Predicated region
    $region42: #{generator_forward.3} parent=1 // pred_check
      _
    $region43: #{generator_forward.3} parent=1 // pred_check_branch
      %47 = sbr.rel (0) target = $region45
    $region44: #{generator_forward.3} parent=1 // pred_region
      %48 = dma.done [#allocation3], 14336
    $region45: #{generator_forward.3} parent=1 // pred_fallthru
      _
    %v50 = vld [vmem:[%s0] sm:$0xff]
    %v51 = vpack.c.bf16 %v50, %v50
    %v52 = vld [vmem:[%s1] sm:$0xf]
    %v53 = vld [vmem:[%s1 + $0x4] sm:$0xf]
    %v54 = vld [vmem:[%s1 + $0x8] sm:$0xf]
    %v55 = vld [vmem:[%s1 + $0xc] sm:$0xf]
    %v56 = vld [vmem:[%s1 + $0x10] sm:$0xf]
    %v57 = vld [vmem:[%s1 + $0x14] sm:$0xf]
    %v58 = vld [vmem:[%s1 + $0x18] sm:$0xf]
    %v59 = vld [vmem:[%s1 + $0x1c] sm:$0xf]
    %v60 = vld [vmem:[%s1 + $0x20] sm:$0xf]
    %v61 = vld [vmem:[%s1 + $0x24] sm:$0xf]
    %v62 = vld [vmem:[%s1 + $0x28] sm:$0xf]
    %v63 = vld [vmem:[%s1 + $0x2c] sm:$0xf]
    %v64 = vld [vmem:[%s1 + $0x30] sm:$0xf]
    %v65 = vld [vmem:[%s1 + $0x34] sm:$0xf]
    %v66 = vld [vmem:[%s1 + $0x38] sm:$0xf]
    %v67 = vld [vmem:[%s1 + $0x3c] sm:$0xf]
    %v68 = vld [vmem:[%s2] sm:$0x1]
    %v70 = vlaneseq
    %v71 = vshrl.u32 %v70, 7
    %v72 = vsub.s32 0, %v71
    %v73 = vrot.slane %v68, %v72
    %v91 = vunpack.c.l.b16 %v52
    %v92 = vunpack.c.l.b16 %v53
    %v93 = vunpack.c.l.b16 %v54
    %v94 = vunpack.c.l.b16 %v55
    %v95 = vunpack.c.l.b16 %v56
    %v96 = vunpack.c.l.b16 %v57
    %v97 = vunpack.c.l.b16 %v58
    %v98 = vunpack.c.l.b16 %v59
    %v99 = vunpack.c.l.b16 %v60
    %v100 = vunpack.c.l.b16 %v61
    %v101 = vunpack.c.l.b16 %v62
    %v102 = vunpack.c.l.b16 %v63
    %v103 = vunpack.c.l.b16 %v64
    %v104 = vunpack.c.l.b16 %v65
    %v105 = vunpack.c.l.b16 %v66
    %v106 = vunpack.c.l.b16 %v67
    %v107 = vpack.c.b16 %v92, %v91
    %v108 = vpack.c.b16 %v94, %v93
    %v109 = vpack.c.b16 %v96, %v95
    %v110 = vpack.c.b16 %v98, %v97
    %v111 = vpack.c.b16 %v100, %v99
    %v112 = vpack.c.b16 %v102, %v101
    %v113 = vpack.c.b16 %v104, %v103
    %v114 = vpack.c.b16 %v106, %v105
    %123 = vmatprep.subr.bf16.mxu0 0
    %124 = vmatpush1.bf16.msra.mxu0 %v107
    %125 = vmatprep.subr.bf16.mxu0 0
    %126 = vmatpush1.bf16.msra.mxu0 %v108
    %127 = vmatprep.subr.bf16.mxu0 0
    %128 = vmatpush1.bf16.msra.mxu0 %v109
    %129 = vmatprep.subr.bf16.mxu0 0
    %130 = vmatpush1.bf16.msra.mxu0 %v110
    %131 = vmatprep.subr.bf16.mxu0 0
    %132 = vmatpush1.bf16.msra.mxu0 %v111
    %133 = vmatprep.subr.bf16.mxu0 0
    %134 = vmatpush1.bf16.msra.mxu0 %v112
    %135 = vmatprep.subr.bf16.mxu0 0
    %136 = vmatpush1.bf16.msra.mxu0 %v113
    %137 = vmatprep.subr.bf16.mxu0 0
    %138 = vmatpush1.bf16.msra.mxu0 %v114
    %139 = vmatprep.subr.bf16.mxu0 0
    %140 = vmatpush1.bf16.msra.mxu0 0
    %141 = vmatprep.subr.bf16.mxu0 0
    %142 = vmatpush1.bf16.msra.mxu0 0
    %143 = vmatprep.subr.bf16.mxu0 0
    %144 = vmatpush1.bf16.msra.mxu0 0
    %145 = vmatprep.subr.bf16.mxu0 0
    %146 = vmatpush1.bf16.msra.mxu0 0
    %147 = vmatprep.subr.bf16.mxu0 0
    %148 = vmatpush1.bf16.msra.mxu0 0
    %149 = vmatprep.subr.bf16.mxu0 0
    %150 = vmatpush1.bf16.msra.mxu0 0
    %151 = vmatprep.subr.bf16.mxu0 0
    %152 = vmatpush1.bf16.msra.mxu0 0
    %153 = vmatprep.subr.bf16.mxu0 0
    %154 = vmatpush1.bf16.msra.mxu0 0
    %155 = vmatprep.mubr.bf16.mxu0 0
    %156 = vmatmul.mubr.bf16.gmra.mrb[0].mxu0 %v51
    %v157 = vpop.f32.mrb[0].mxu0
    %v158 = vadd.f32 %v73, %v157
    %v159 = vpop.f32.mrb[0].mxu0
    %v160 = vpop.f32.mrb[0].mxu0
    %v161 = vpop.f32.mrb[0].mxu0
    %162 = vdwg.mxu0
    %v163 = vmax.f32 %v158, 0.0
    %v164 = vpack.c.bf16 %v163, %v163
    %v165 = vld [vmem:[%s3] sm:$0xff]
    %v166 = vld [vmem:[%s3 + $0x8] sm:$0xff]
    %v167 = vld [vmem:[%s3 + $0x10] sm:$0xff]
    %v168 = vld [vmem:[%s3 + $0x18] sm:$0xff]
    %v169 = vld [vmem:[%s3 + $0x20] sm:$0xff]
    %v170 = vld [vmem:[%s3 + $0x28] sm:$0xff]
    %v171 = vld [vmem:[%s3 + $0x30] sm:$0xff]
    %v172 = vld [vmem:[%s3 + $0x38] sm:$0xff]
    %v173 = vld [vmem:[%s3 + $0x40] sm:$0xff]
    %v174 = vld [vmem:[%s3 + $0x48] sm:$0xff]
    %v175 = vld [vmem:[%s3 + $0x50] sm:$0xff]
    %v176 = vld [vmem:[%s3 + $0x58] sm:$0xff]
    %v177 = vld [vmem:[%s3 + $0x60] sm:$0xff]
    %v178 = vld [vmem:[%s3 + $0x68] sm:$0xff]
    %v179 = vld [vmem:[%s3 + $0x70] sm:$0xff]
    %v180 = vld [vmem:[%s3 + $0x78] sm:$0xff]
    %v197 = vunpack.c.l.b16 %v165
    %v198 = vunpack.c.h.b16 %v165
    %v199 = vunpack.c.l.b16 %v166
    %v200 = vunpack.c.h.b16 %v166
    %v201 = vunpack.c.l.b16 %v167
    %v202 = vunpack.c.h.b16 %v167
    %v203 = vunpack.c.l.b16 %v168
    %v204 = vunpack.c.h.b16 %v168
    %v205 = vunpack.c.l.b16 %v169
    %v206 = vunpack.c.h.b16 %v169
    %v207 = vunpack.c.l.b16 %v170
    %v208 = vunpack.c.h.b16 %v170
    %v209 = vunpack.c.l.b16 %v171
    %v210 = vunpack.c.h.b16 %v171
    %v211 = vunpack.c.l.b16 %v172
    %v212 = vunpack.c.h.b16 %v172
    %v213 = vunpack.c.l.b16 %v173
    %v214 = vunpack.c.h.b16 %v173
    %v215 = vunpack.c.l.b16 %v174
    %v216 = vunpack.c.h.b16 %v174
    %v217 = vunpack.c.l.b16 %v175
    %v218 = vunpack.c.h.b16 %v175
    %v219 = vunpack.c.l.b16 %v176
    %v220 = vunpack.c.h.b16 %v176
    %v221 = vunpack.c.l.b16 %v177
    %v222 = vunpack.c.h.b16 %v177
    %v223 = vunpack.c.l.b16 %v178
    %v224 = vunpack.c.h.b16 %v178
    %v225 = vunpack.c.l.b16 %v179
    %v226 = vunpack.c.h.b16 %v179
    %v227 = vunpack.c.l.b16 %v180
    %v228 = vunpack.c.h.b16 %v180
    %v229 = vpack.c.b16 %v199, %v197
    %v230 = vpack.c.b16 %v200, %v198
    %v231 = vpack.c.b16 %v203, %v201
    %v232 = vpack.c.b16 %v204, %v202
    %v233 = vpack.c.b16 %v207, %v205
    %v234 = vpack.c.b16 %v208, %v206
    %v235 = vpack.c.b16 %v211, %v209
    %v236 = vpack.c.b16 %v212, %v210
    %v237 = vpack.c.b16 %v215, %v213
    %v238 = vpack.c.b16 %v216, %v214
    %v239 = vpack.c.b16 %v219, %v217
    %v240 = vpack.c.b16 %v220, %v218
    %v241 = vpack.c.b16 %v223, %v221
    %v242 = vpack.c.b16 %v224, %v222
    %v243 = vpack.c.b16 %v227, %v225
    %v244 = vpack.c.b16 %v228, %v226
    %261 = vmatprep.subr.bf16.mxu0 %v230
    %262 = vmatpush1.bf16.msra.mxu0 %v229
    %263 = vmatprep.subr.bf16.mxu0 %v232
    %264 = vmatpush1.bf16.msra.mxu0 %v231
    %265 = vmatprep.subr.bf16.mxu0 %v234
    %266 = vmatpush1.bf16.msra.mxu0 %v233
    %267 = vmatprep.subr.bf16.mxu0 %v236
    %268 = vmatpush1.bf16.msra.mxu0 %v235
    %269 = vmatprep.subr.bf16.mxu0 %v238
    %270 = vmatpush1.bf16.msra.mxu0 %v237
    %271 = vmatprep.subr.bf16.mxu0 %v240
    %272 = vmatpush1.bf16.msra.mxu0 %v239
    %273 = vmatprep.subr.bf16.mxu0 %v242
    %274 = vmatpush1.bf16.msra.mxu0 %v241
    %275 = vmatprep.subr.bf16.mxu0 %v244
    %276 = vmatpush1.bf16.msra.mxu0 %v243
    %277 = vmatprep.subr.bf16.mxu0 0
    %278 = vmatpush1.bf16.msra.mxu0 0
    %279 = vmatprep.subr.bf16.mxu0 0
    %280 = vmatpush1.bf16.msra.mxu0 0
    %281 = vmatprep.subr.bf16.mxu0 0
    %282 = vmatpush1.bf16.msra.mxu0 0
    %283 = vmatprep.subr.bf16.mxu0 0
    %284 = vmatpush1.bf16.msra.mxu0 0
    %285 = vmatprep.subr.bf16.mxu0 0
    %286 = vmatpush1.bf16.msra.mxu0 0
    %287 = vmatprep.subr.bf16.mxu0 0
    %288 = vmatpush1.bf16.msra.mxu0 0
    %289 = vmatprep.subr.bf16.mxu0 0
    %290 = vmatpush1.bf16.msra.mxu0 0
    %291 = vmatprep.subr.bf16.mxu0 0
    %292 = vmatpush1.bf16.msra.mxu0 0
    %293 = vmatprep.mubr.bf16.mxu0 0
    %294 = vmatmul.mubr.bf16.gmra.mrb[0].mxu0 %v164
    %v295 = vpop.f32.mrb[0].mxu0
    %v296 = vadd.f32 0.0, %v295
    %v297 = vpop.f32.mrb[0].mxu0
    %v298 = vadd.f32 0.0, %v297
    %v299 = vpop.f32.mrb[0].mxu0
    %v300 = vpop.f32.mrb[0].mxu0
    %301 = vdwg.mxu0
    %v302 = vld [vmem:[%s4] sm:$0x3]
    %v303 = vmul.f32 %v302, 0.125
    %v304 = vld [vmem:[%s5] sm:$0x3]
    %v305 = vmul.f32 %v304, 0.125
    %v306 = vmul.f32 %v303, %v303
    %v307 = vsub.f32 %v305, %v306
    %v308 = vmax.f32 %v307, 0.0
    %v309 = vld [vmem:[%s6] sm:$0x3]
    %v310 = vadd.f32 %v308, 1e-05
    %v311 = vrsqrt.pop %v310
    %v312 = vmul.f32 %v309, %v311
    %v313 = vld [vmem:[%s7] sm:$0x3]
    %v314 = vmul.f32 %v303, %v312
    %v315 = vsub.f32 %v313, %v314
    %v317 = vlaneseq
    %v318 = vshrl.u32 %v317, 7
    %v319 = vsub.s32 0, %v318
    %v320 = vrot.slane %v312, %v319
    %v321 = vlaneseq
    %v322 = vshrl.u32 %v321, 7
    %v323 = vsub.s32 1, %v322
    %v324 = vrot.slane %v312, %v323
    %v327 = vmul.f32 %v296, %v320
    %v328 = vmul.f32 %v298, %v324
    %v330 = vlaneseq
    %v331 = vshrl.u32 %v330, 7
    %v332 = vsub.s32 0, %v331
    %v333 = vrot.slane %v315, %v332
    %v334 = vlaneseq
    %v335 = vshrl.u32 %v334, 7
    %v336 = vsub.s32 1, %v335
    %v337 = vrot.slane %v315, %v336
    %v340 = vadd.f32 %v327, %v333
    %v341 = vadd.f32 %v328, %v337
    %v342 = vmax.f32 %v340, 0.0
    %v343 = vmax.f32 %v341, 0.0
    %v344 = vpack.c.bf16 %v342, %v342
    %v345 = vpack.c.bf16 %v343, %v343
    %v346 = vld [vmem:[#allocation2] sm:$0xff]
    %v347 = vld [vmem:[#allocation2 + $0x8] sm:$0xff]
    %v348 = vld [vmem:[#allocation2 + $0x10] sm:$0xff]
    %v349 = vld [vmem:[#allocation2 + $0x18] sm:$0xf]
    %v350 = vld [vmem:[#allocation2 + $0x1c] sm:$0xff]
    %v351 = vld [vmem:[#allocation2 + $0x24] sm:$0xff]
    %v352 = vld [vmem:[#allocation2 + $0x2c] sm:$0xff]
    %v353 = vld [vmem:[#allocation2 + $0x34] sm:$0xf]
    %v354 = vld [vmem:[#allocation2 + $0x38] sm:$0xff]
    %v355 = vld [vmem:[#allocation2 + $0x40] sm:$0xff]
    %v356 = vld [vmem:[#allocation2 + $0x48] sm:$0xff]
    %v357 = vld [vmem:[#allocation2 + $0x50] sm:$0xf]
    %v358 = vld [vmem:[#allocation2 + $0x54] sm:$0xff]
    %v359 = vld [vmem:[#allocation2 + $0x5c] sm:$0xff]
    %v360 = vld [vmem:[#allocation2 + $0x64] sm:$0xff]
    %v361 = vld [vmem:[#allocation2 + $0x6c] sm:$0xf]
    %v362 = vld [vmem:[#allocation2 + $0x70] sm:$0xff]
    %v363 = vld [vmem:[#allocation2 + $0x78] sm:$0xff]
    %v364 = vld [vmem:[#allocation2 + $0x80] sm:$0xff]
    %v365 = vld [vmem:[#allocation2 + $0x88] sm:$0xf]
    %v366 = vld [vmem:[#allocation2 + $0x8c] sm:$0xff]
    %v367 = vld [vmem:[#allocation2 + $0x94] sm:$0xff]
    %v368 = vld [vmem:[#allocation2 + $0x9c] sm:$0xff]
    %v369 = vld [vmem:[#allocation2 + $0xa4] sm:$0xf]
    %v370 = vld [vmem:[#allocation2 + $0xa8] sm:$0xff]
    %v371 = vld [vmem:[#allocation2 + $0xb0] sm:$0xff]
    %v372 = vld [vmem:[#allocation2 + $0xb8] sm:$0xff]
    %v373 = vld [vmem:[#allocation2 + $0xc0] sm:$0xf]
    %v374 = vld [vmem:[#allocation2 + $0xc4] sm:$0xff]
    %v375 = vld [vmem:[#allocation2 + $0xcc] sm:$0xff]
    %v376 = vld [vmem:[#allocation2 + $0xd4] sm:$0xff]
    %v377 = vld [vmem:[#allocation2 + $0xdc] sm:$0xf]
    %v378 = vld [vmem:[#allocation2 + $0xe0] sm:$0xff]
    %v379 = vld [vmem:[#allocation2 + $0xe8] sm:$0xff]
    %v380 = vld [vmem:[#allocation2 + $0xf0] sm:$0xff]
    %v381 = vld [vmem:[#allocation2 + $0xf8] sm:$0xf]
    %v382 = vld [vmem:[#allocation2 + $0xfc] sm:$0xff]
    %v383 = vld [vmem:[#allocation2 + $0x104] sm:$0xff]
    %v384 = vld [vmem:[#allocation2 + $0x10c] sm:$0xff]
    %v385 = vld [vmem:[#allocation2 + $0x114] sm:$0xf]
    %v386 = vld [vmem:[#allocation2 + $0x118] sm:$0xff]
    %v387 = vld [vmem:[#allocation2 + $0x120] sm:$0xff]
    %v388 = vld [vmem:[#allocation2 + $0x128] sm:$0xff]
    %v389 = vld [vmem:[#allocation2 + $0x130] sm:$0xf]
    %v390 = vld [vmem:[#allocation2 + $0x134] sm:$0xff]
    %v391 = vld [vmem:[#allocation2 + $0x13c] sm:$0xff]
    %v392 = vld [vmem:[#allocation2 + $0x144] sm:$0xff]
    %v393 = vld [vmem:[#allocation2 + $0x14c] sm:$0xf]
    %v394 = vld [vmem:[#allocation2 + $0x150] sm:$0xff]
    %v395 = vld [vmem:[#allocation2 + $0x158] sm:$0xff]
    %v396 = vld [vmem:[#allocation2 + $0x160] sm:$0xff]
    %v397 = vld [vmem:[#allocation2 + $0x168] sm:$0xf]
    %v398 = vld [vmem:[#allocation2 + $0x16c] sm:$0xff]
    %v399 = vld [vmem:[#allocation2 + $0x174] sm:$0xff]
    %v400 = vld [vmem:[#allocation2 + $0x17c] sm:$0xff]
    %v401 = vld [vmem:[#allocation2 + $0x184] sm:$0xf]
    %v402 = vld [vmem:[#allocation2 + $0x188] sm:$0xff]
    %v403 = vld [vmem:[#allocation2 + $0x190] sm:$0xff]
    %v404 = vld [vmem:[#allocation2 + $0x198] sm:$0xff]
    %v405 = vld [vmem:[#allocation2 + $0x1a0] sm:$0xf]
    %v406 = vld [vmem:[#allocation2 + $0x1a4] sm:$0xff]
    %v407 = vld [vmem:[#allocation2 + $0x1ac] sm:$0xff]
    %v408 = vld [vmem:[#allocation2 + $0x1b4] sm:$0xff]
    %v409 = vld [vmem:[#allocation2 + $0x1bc] sm:$0xf]
    %v410 = vld [vmem:[#allocation2 + $0x1c0] sm:$0xff]
    %v411 = vld [vmem:[#allocation2 + $0x1c8] sm:$0xff]
    %v412 = vld [vmem:[#allocation2 + $0x1d0] sm:$0xff]
    %v413 = vld [vmem:[#allocation2 + $0x1d8] sm:$0xf]
    %v414 = vld [vmem:[#allocation2 + $0x1dc] sm:$0xff]
    %v415 = vld [vmem:[#allocation2 + $0x1e4] sm:$0xff]
    %v416 = vld [vmem:[#allocation2 + $0x1ec] sm:$0xff]
    %v417 = vld [vmem:[#allocation2 + $0x1f4] sm:$0xf]
    %v418 = vld [vmem:[#allocation2 + $0x1f8] sm:$0xff]
    %v419 = vld [vmem:[#allocation2 + $0x200] sm:$0xff]
    %v420 = vld [vmem:[#allocation2 + $0x208] sm:$0xff]
    %v421 = vld [vmem:[#allocation2 + $0x210] sm:$0xf]
    %v422 = vld [vmem:[#allocation2 + $0x214] sm:$0xff]
    %v423 = vld [vmem:[#allocation2 + $0x21c] sm:$0xff]
    %v424 = vld [vmem:[#allocation2 + $0x224] sm:$0xff]
    %v425 = vld [vmem:[#allocation2 + $0x22c] sm:$0xf]
    %v426 = vld [vmem:[#allocation2 + $0x230] sm:$0xff]
    %v427 = vld [vmem:[#allocation2 + $0x238] sm:$0xff]
    %v428 = vld [vmem:[#allocation2 + $0x240] sm:$0xff]
    %v429 = vld [vmem:[#allocation2 + $0x248] sm:$0xf]
    %v430 = vld [vmem:[#allocation2 + $0x24c] sm:$0xff]
    %v431 = vld [vmem:[#allocation2 + $0x254] sm:$0xff]
    %v432 = vld [vmem:[#allocation2 + $0x25c] sm:$0xff]
    %v433 = vld [vmem:[#allocation2 + $0x264] sm:$0xf]
    %v434 = vld [vmem:[#allocation2 + $0x268] sm:$0xff]
    %v435 = vld [vmem:[#allocation2 + $0x270] sm:$0xff]
    %v436 = vld [vmem:[#allocation2 + $0x278] sm:$0xff]
    %v437 = vld [vmem:[#allocation2 + $0x280] sm:$0xf]
    %v438 = vld [vmem:[#allocation2 + $0x284] sm:$0xff]
    %v439 = vld [vmem:[#allocation2 + $0x28c] sm:$0xff]
    %v440 = vld [vmem:[#allocation2 + $0x294] sm:$0xff]
    %v441 = vld [vmem:[#allocation2 + $0x29c] sm:$0xf]
    %v442 = vld [vmem:[#allocation2 + $0x2a0] sm:$0xff]
    %v443 = vld [vmem:[#allocation2 + $0x2a8] sm:$0xff]
    %v444 = vld [vmem:[#allocation2 + $0x2b0] sm:$0xff]
    %v445 = vld [vmem:[#allocation2 + $0x2b8] sm:$0xf]
    %v446 = vld [vmem:[#allocation2 + $0x2bc] sm:$0xff]
    %v447 = vld [vmem:[#allocation2 + $0x2c4] sm:$0xff]
    %v448 = vld [vmem:[#allocation2 + $0x2cc] sm:$0xff]
    %v449 = vld [vmem:[#allocation2 + $0x2d4] sm:$0xf]
    %v450 = vld [vmem:[#allocation2 + $0x2d8] sm:$0xff]
    %v451 = vld [vmem:[#allocation2 + $0x2e0] sm:$0xff]
    %v452 = vld [vmem:[#allocation2 + $0x2e8] sm:$0xff]
    %v453 = vld [vmem:[#allocation2 + $0x2f0] sm:$0xf]
    %v454 = vld [vmem:[#allocation2 + $0x2f4] sm:$0xff]
    %v455 = vld [vmem:[#allocation2 + $0x2fc] sm:$0xff]
    %v456 = vld [vmem:[#allocation2 + $0x304] sm:$0xff]
    %v457 = vld [vmem:[#allocation2 + $0x30c] sm:$0xf]
    %v458 = vld [vmem:[#allocation2 + $0x310] sm:$0xff]
    %v459 = vld [vmem:[#allocation2 + $0x318] sm:$0xff]
    %v460 = vld [vmem:[#allocation2 + $0x320] sm:$0xff]
    %v461 = vld [vmem:[#allocation2 + $0x328] sm:$0xf]
    %v462 = vld [vmem:[#allocation2 + $0x32c] sm:$0xff]
    %v463 = vld [vmem:[#allocation2 + $0x334] sm:$0xff]
    %v464 = vld [vmem:[#allocation2 + $0x33c] sm:$0xff]
    %v465 = vld [vmem:[#allocation2 + $0x344] sm:$0xf]
    %v466 = vld [vmem:[#allocation2 + $0x348] sm:$0xff]
    %v467 = vld [vmem:[#allocation2 + $0x350] sm:$0xff]
    %v468 = vld [vmem:[#allocation2 + $0x358] sm:$0xff]
    %v469 = vld [vmem:[#allocation2 + $0x360] sm:$0xf]
    %v470 = vld [vmem:[#allocation2 + $0x364] sm:$0xff]
    %v471 = vld [vmem:[#allocation2 + $0x36c] sm:$0xff]
    %v472 = vld [vmem:[#allocation2 + $0x374] sm:$0xff]
    %v473 = vld [vmem:[#allocation2 + $0x37c] sm:$0xf]
    %v474 = vld [vmem:[%s9] sm:$0xff]
    %v476 = vlaneseq
    %v477 = vshrl.u32 %v476, 7
    %v478 = vsub.s32 0, %v477
    %v479 = vrot.slane %v474, %v478
    %v480 = vlaneseq
    %v481 = vshrl.u32 %v480, 7
    %v482 = vsub.s32 1, %v481
    %v483 = vrot.slane %v474, %v482
    %v484 = vlaneseq
    %v485 = vshrl.u32 %v484, 7
    %v486 = vsub.s32 2, %v485
    %v487 = vrot.slane %v474, %v486
    %v488 = vlaneseq
    %v489 = vshrl.u32 %v488, 7
    %v490 = vsub.s32 3, %v489
    %v491 = vrot.slane %v474, %v490
    %v492 = vlaneseq
    %v493 = vshrl.u32 %v492, 7
    %v494 = vsub.s32 4, %v493
    %v495 = vrot.slane %v474, %v494
    %v496 = vlaneseq
    %v497 = vshrl.u32 %v496, 7
    %v498 = vsub.s32 5, %v497
    %v499 = vrot.slane %v474, %v498
    %v500 = vlaneseq
    %v501 = vshrl.u32 %v500, 7
    %v502 = vsub.s32 6, %v501
    %v503 = vrot.slane %v474, %v502
    %v639 = vunpack.c.l.b16 %v346
    %v640 = vunpack.c.h.b16 %v346
    %v641 = vunpack.c.l.b16 %v347
    %v642 = vunpack.c.h.b16 %v347
    %v643 = vunpack.c.l.b16 %v348
    %v644 = vunpack.c.h.b16 %v348
    %v645 = vunpack.c.l.b16 %v349
    %v646 = vunpack.c.l.b16 %v350
    %v647 = vunpack.c.h.b16 %v350
    %v648 = vunpack.c.l.b16 %v351
    %v649 = vunpack.c.h.b16 %v351
    %v650 = vunpack.c.l.b16 %v352
    %v651 = vunpack.c.h.b16 %v352
    %v652 = vunpack.c.l.b16 %v353
    %v653 = vunpack.c.l.b16 %v354
    %v654 = vunpack.c.h.b16 %v354
    %v655 = vunpack.c.l.b16 %v355
    %v656 = vunpack.c.h.b16 %v355
    %v657 = vunpack.c.l.b16 %v356
    %v658 = vunpack.c.h.b16 %v356
    %v659 = vunpack.c.l.b16 %v357
    %v660 = vunpack.c.l.b16 %v358
    %v661 = vunpack.c.h.b16 %v358
    %v662 = vunpack.c.l.b16 %v359
    %v663 = vunpack.c.h.b16 %v359
    %v664 = vunpack.c.l.b16 %v360
    %v665 = vunpack.c.h.b16 %v360
    %v666 = vunpack.c.l.b16 %v361
    %v667 = vunpack.c.l.b16 %v362
    %v668 = vunpack.c.h.b16 %v362
    %v669 = vunpack.c.l.b16 %v363
    %v670 = vunpack.c.h.b16 %v363
    %v671 = vunpack.c.l.b16 %v364
    %v672 = vunpack.c.h.b16 %v364
    %v673 = vunpack.c.l.b16 %v365
    %v674 = vunpack.c.l.b16 %v366
    %v675 = vunpack.c.h.b16 %v366
    %v676 = vunpack.c.l.b16 %v367
    %v677 = vunpack.c.h.b16 %v367
    %v678 = vunpack.c.l.b16 %v368
    %v679 = vunpack.c.h.b16 %v368
    %v680 = vunpack.c.l.b16 %v369
    %v681 = vunpack.c.l.b16 %v370
    %v682 = vunpack.c.h.b16 %v370
    %v683 = vunpack.c.l.b16 %v371
    %v684 = vunpack.c.h.b16 %v371
    %v685 = vunpack.c.l.b16 %v372
    %v686 = vunpack.c.h.b16 %v372
    %v687 = vunpack.c.l.b16 %v373
    %v688 = vunpack.c.l.b16 %v374
    %v689 = vunpack.c.h.b16 %v374
    %v690 = vunpack.c.l.b16 %v375
    %v691 = vunpack.c.h.b16 %v375
    %v692 = vunpack.c.l.b16 %v376
    %v693 = vunpack.c.h.b16 %v376
    %v694 = vunpack.c.l.b16 %v377
    %v695 = vunpack.c.l.b16 %v378
    %v696 = vunpack.c.h.b16 %v378
    %v697 = vunpack.c.l.b16 %v379
    %v698 = vunpack.c.h.b16 %v379
    %v699 = vunpack.c.l.b16 %v380
    %v700 = vunpack.c.h.b16 %v380
    %v701 = vunpack.c.l.b16 %v381
    %v702 = vunpack.c.l.b16 %v382
    %v703 = vunpack.c.h.b16 %v382
    %v704 = vunpack.c.l.b16 %v383
    %v705 = vunpack.c.h.b16 %v383
    %v706 = vunpack.c.l.b16 %v384
    %v707 = vunpack.c.h.b16 %v384
    %v708 = vunpack.c.l.b16 %v385
    %v709 = vunpack.c.l.b16 %v386
    %v710 = vunpack.c.h.b16 %v386
    %v711 = vunpack.c.l.b16 %v387
    %v712 = vunpack.c.h.b16 %v387
    %v713 = vunpack.c.l.b16 %v388
    %v714 = vunpack.c.h.b16 %v388
    %v715 = vunpack.c.l.b16 %v389
    %v716 = vunpack.c.l.b16 %v390
    %v717 = vunpack.c.h.b16 %v390
    %v718 = vunpack.c.l.b16 %v391
    %v719 = vunpack.c.h.b16 %v391
    %v720 = vunpack.c.l.b16 %v392
    %v721 = vunpack.c.h.b16 %v392
    %v722 = vunpack.c.l.b16 %v393
    %v723 = vunpack.c.l.b16 %v394
    %v724 = vunpack.c.h.b16 %v394
    %v725 = vunpack.c.l.b16 %v395
    %v726 = vunpack.c.h.b16 %v395
    %v727 = vunpack.c.l.b16 %v396
    %v728 = vunpack.c.h.b16 %v396
    %v729 = vunpack.c.l.b16 %v397
    %v730 = vunpack.c.l.b16 %v398
    %v731 = vunpack.c.h.b16 %v398
    %v732 = vunpack.c.l.b16 %v399
    %v733 = vunpack.c.h.b16 %v399
    %v734 = vunpack.c.l.b16 %v400
    %v735 = vunpack.c.h.b16 %v400
    %v736 = vunpack.c.l.b16 %v401
    %v737 = vunpack.c.l.b16 %v402
    %v738 = vunpack.c.h.b16 %v402
    %v739 = vunpack.c.l.b16 %v403
    %v740 = vunpack.c.h.b16 %v403
    %v741 = vunpack.c.l.b16 %v404
    %v742 = vunpack.c.h.b16 %v404
    %v743 = vunpack.c.l.b16 %v405
    %v744 = vunpack.c.l.b16 %v406
    %v745 = vunpack.c.h.b16 %v406
    %v746 = vunpack.c.l.b16 %v407
    %v747 = vunpack.c.h.b16 %v407
    %v748 = vunpack.c.l.b16 %v408
    %v749 = vunpack.c.h.b16 %v408
    %v750 = vunpack.c.l.b16 %v409
    %v751 = vunpack.c.l.b16 %v410
    %v752 = vunpack.c.h.b16 %v410
    %v753 = vunpack.c.l.b16 %v411
    %v754 = vunpack.c.h.b16 %v411
    %v755 = vunpack.c.l.b16 %v412
    %v756 = vunpack.c.h.b16 %v412
    %v757 = vunpack.c.l.b16 %v413
    %v758 = vunpack.c.l.b16 %v414
    %v759 = vunpack.c.h.b16 %v414
    %v760 = vunpack.c.l.b16 %v415
    %v761 = vunpack.c.h.b16 %v415
    %v762 = vunpack.c.l.b16 %v416
    %v763 = vunpack.c.h.b16 %v416
    %v764 = vunpack.c.l.b16 %v417
    %v765 = vunpack.c.l.b16 %v418
    %v766 = vunpack.c.h.b16 %v418
    %v767 = vunpack.c.l.b16 %v419
    %v768 = vunpack.c.h.b16 %v419
    %v769 = vunpack.c.l.b16 %v420
    %v770 = vunpack.c.h.b16 %v420
    %v771 = vunpack.c.l.b16 %v421
    %v772 = vunpack.c.l.b16 %v422
    %v773 = vunpack.c.h.b16 %v422
    %v774 = vunpack.c.l.b16 %v423
    %v775 = vunpack.c.h.b16 %v423
    %v776 = vunpack.c.l.b16 %v424
    %v777 = vunpack.c.h.b16 %v424
    %v778 = vunpack.c.l.b16 %v425
    %v779 = vunpack.c.l.b16 %v426
    %v780 = vunpack.c.h.b16 %v426
    %v781 = vunpack.c.l.b16 %v427
    %v782 = vunpack.c.h.b16 %v427
    %v783 = vunpack.c.l.b16 %v428
    %v784 = vunpack.c.h.b16 %v428
    %v785 = vunpack.c.l.b16 %v429
    %v786 = vunpack.c.l.b16 %v430
    %v787 = vunpack.c.h.b16 %v430
    %v788 = vunpack.c.l.b16 %v431
    %v789 = vunpack.c.h.b16 %v431
    %v790 = vunpack.c.l.b16 %v432
    %v791 = vunpack.c.h.b16 %v432
    %v792 = vunpack.c.l.b16 %v433
    %v793 = vunpack.c.l.b16 %v434
    %v794 = vunpack.c.h.b16 %v434
    %v795 = vunpack.c.l.b16 %v435
    %v796 = vunpack.c.h.b16 %v435
    %v797 = vunpack.c.l.b16 %v436
    %v798 = vunpack.c.h.b16 %v436
    %v799 = vunpack.c.l.b16 %v437
    %v800 = vunpack.c.l.b16 %v438
    %v801 = vunpack.c.h.b16 %v438
    %v802 = vunpack.c.l.b16 %v439
    %v803 = vunpack.c.h.b16 %v439
    %v804 = vunpack.c.l.b16 %v440
    %v805 = vunpack.c.h.b16 %v440
    %v806 = vunpack.c.l.b16 %v441
    %v807 = vunpack.c.l.b16 %v442
    %v808 = vunpack.c.h.b16 %v442
    %v809 = vunpack.c.l.b16 %v443
    %v810 = vunpack.c.h.b16 %v443
    %v811 = vunpack.c.l.b16 %v444
    %v812 = vunpack.c.h.b16 %v444
    %v813 = vunpack.c.l.b16 %v445
    %v814 = vunpack.c.l.b16 %v446
    %v815 = vunpack.c.h.b16 %v446
    %v816 = vunpack.c.l.b16 %v447
    %v817 = vunpack.c.h.b16 %v447
    %v818 = vunpack.c.l.b16 %v448
    %v819 = vunpack.c.h.b16 %v448
    %v820 = vunpack.c.l.b16 %v449
    %v821 = vunpack.c.l.b16 %v450
    %v822 = vunpack.c.h.b16 %v450
    %v823 = vunpack.c.l.b16 %v451
    %v824 = vunpack.c.h.b16 %v451
    %v825 = vunpack.c.l.b16 %v452
    %v826 = vunpack.c.h.b16 %v452
    %v827 = vunpack.c.l.b16 %v453
    %v828 = vunpack.c.l.b16 %v454
    %v829 = vunpack.c.h.b16 %v454
    %v830 = vunpack.c.l.b16 %v455
    %v831 = vunpack.c.h.b16 %v455
    %v832 = vunpack.c.l.b16 %v456
    %v833 = vunpack.c.h.b16 %v456
    %v834 = vunpack.c.l.b16 %v457
    %v835 = vunpack.c.l.b16 %v458
    %v836 = vunpack.c.h.b16 %v458
    %v837 = vunpack.c.l.b16 %v459
    %v838 = vunpack.c.h.b16 %v459
    %v839 = vunpack.c.l.b16 %v460
    %v840 = vunpack.c.h.b16 %v460
    %v841 = vunpack.c.l.b16 %v461
    %v842 = vunpack.c.l.b16 %v462
    %v843 = vunpack.c.h.b16 %v462
    %v844 = vunpack.c.l.b16 %v463
    %v845 = vunpack.c.h.b16 %v463
    %v846 = vunpack.c.l.b16 %v464
    %v847 = vunpack.c.h.b16 %v464
    %v848 = vunpack.c.l.b16 %v465
    %v849 = vunpack.c.l.b16 %v466
    %v850 = vunpack.c.h.b16 %v466
    %v851 = vunpack.c.l.b16 %v467
    %v852 = vunpack.c.h.b16 %v467
    %v853 = vunpack.c.l.b16 %v468
    %v854 = vunpack.c.h.b16 %v468
    %v855 = vunpack.c.l.b16 %v469
    %v856 = vunpack.c.l.b16 %v470
    %v857 = vunpack.c.h.b16 %v470
    %v858 = vunpack.c.l.b16 %v471
    %v859 = vunpack.c.h.b16 %v471
    %v860 = vunpack.c.l.b16 %v472
    %v861 = vunpack.c.h.b16 %v472
    %v862 = vunpack.c.l.b16 %v473
    %v863 = vpack.c.b16 %v646, %v639
    %v864 = vpack.c.b16 %v647, %v640
    %v865 = vpack.c.b16 %v648, %v641
    %v866 = vpack.c.b16 %v649, %v642
    %v867 = vpack.c.b16 %v650, %v643
    %v868 = vpack.c.b16 %v651, %v644
    %v869 = vpack.c.b16 %v652, %v645
    %v870 = vpack.c.b16 %v660, %v653
    %v871 = vpack.c.b16 %v661, %v654
    %v872 = vpack.c.b16 %v662, %v655
    %v873 = vpack.c.b16 %v663, %v656
    %v874 = vpack.c.b16 %v664, %v657
    %v875 = vpack.c.b16 %v665, %v658
    %v876 = vpack.c.b16 %v666, %v659
    %v877 = vpack.c.b16 %v674, %v667
    %v878 = vpack.c.b16 %v675, %v668
    %v879 = vpack.c.b16 %v676, %v669
    %v880 = vpack.c.b16 %v677, %v670
    %v881 = vpack.c.b16 %v678, %v671
    %v882 = vpack.c.b16 %v679, %v672
    %v883 = vpack.c.b16 %v680, %v673
    %v884 = vpack.c.b16 %v688, %v681
    %v885 = vpack.c.b16 %v689, %v682
    %v886 = vpack.c.b16 %v690, %v683
    %v887 = vpack.c.b16 %v691, %v684
    %v888 = vpack.c.b16 %v692, %v685
    %v889 = vpack.c.b16 %v693, %v686
    %v890 = vpack.c.b16 %v694, %v687
    %v891 = vpack.c.b16 %v702, %v695
    %v892 = vpack.c.b16 %v703, %v696
    %v893 = vpack.c.b16 %v704, %v697
    %v894 = vpack.c.b16 %v705, %v698
    %v895 = vpack.c.b16 %v706, %v699
    %v896 = vpack.c.b16 %v707, %v700
    %v897 = vpack.c.b16 %v708, %v701
    %v898 = vpack.c.b16 %v716, %v709
    %v899 = vpack.c.b16 %v717, %v710
    %v900 = vpack.c.b16 %v718, %v711
    %v901 = vpack.c.b16 %v719, %v712
    %v902 = vpack.c.b16 %v720, %v713
    %v903 = vpack.c.b16 %v721, %v714
    %v904 = vpack.c.b16 %v722, %v715
    %v905 = vpack.c.b16 %v730, %v723
    %v906 = vpack.c.b16 %v731, %v724
    %v907 = vpack.c.b16 %v732, %v725
    %v908 = vpack.c.b16 %v733, %v726
    %v909 = vpack.c.b16 %v734, %v727
    %v910 = vpack.c.b16 %v735, %v728
    %v911 = vpack.c.b16 %v736, %v729
    %v912 = vpack.c.b16 %v744, %v737
    %v913 = vpack.c.b16 %v745, %v738
    %v914 = vpack.c.b16 %v746, %v739
    %v915 = vpack.c.b16 %v747, %v740
    %v916 = vpack.c.b16 %v748, %v741
    %v917 = vpack.c.b16 %v749, %v742
    %v918 = vpack.c.b16 %v750, %v743
    %v919 = vpack.c.b16 %v758, %v751
    %v920 = vpack.c.b16 %v759, %v752
    %v921 = vpack.c.b16 %v760, %v753
    %v922 = vpack.c.b16 %v761, %v754
    %v923 = vpack.c.b16 %v762, %v755
    %v924 = vpack.c.b16 %v763, %v756
    %v925 = vpack.c.b16 %v764, %v757
    %v926 = vpack.c.b16 %v772, %v765
    %v927 = vpack.c.b16 %v773, %v766
    %v928 = vpack.c.b16 %v774, %v767
    %v929 = vpack.c.b16 %v775, %v768
    %v930 = vpack.c.b16 %v776, %v769
    %v931 = vpack.c.b16 %v777, %v770
    %v932 = vpack.c.b16 %v778, %v771
    %v933 = vpack.c.b16 %v786, %v779
    %v934 = vpack.c.b16 %v787, %v780
    %v935 = vpack.c.b16 %v788, %v781
    %v936 = vpack.c.b16 %v789, %v782
    %v937 = vpack.c.b16 %v790, %v783
    %v938 = vpack.c.b16 %v791, %v784
    %v939 = vpack.c.b16 %v792, %v785
    %v940 = vpack.c.b16 %v800, %v793
    %v941 = vpack.c.b16 %v801, %v794
    %v942 = vpack.c.b16 %v802, %v795
    %v943 = vpack.c.b16 %v803, %v796
    %v944 = vpack.c.b16 %v804, %v797
    %v945 = vpack.c.b16 %v805, %v798
    %v946 = vpack.c.b16 %v806, %v799
    %v947 = vpack.c.b16 %v814, %v807
    %v948 = vpack.c.b16 %v815, %v808
    %v949 = vpack.c.b16 %v816, %v809
    %v950 = vpack.c.b16 %v817, %v810
    %v951 = vpack.c.b16 %v818, %v811
    %v952 = vpack.c.b16 %v819, %v812
    %v953 = vpack.c.b16 %v820, %v813
    %v954 = vpack.c.b16 %v828, %v821
    %v955 = vpack.c.b16 %v829, %v822
    %v956 = vpack.c.b16 %v830, %v823
    %v957 = vpack.c.b16 %v831, %v824
    %v958 = vpack.c.b16 %v832, %v825
    %v959 = vpack.c.b16 %v833, %v826
    %v960 = vpack.c.b16 %v834, %v827
    %v961 = vpack.c.b16 %v842, %v835
    %v962 = vpack.c.b16 %v843, %v836
    %v963 = vpack.c.b16 %v844, %v837
    %v964 = vpack.c.b16 %v845, %v838
    %v965 = vpack.c.b16 %v846, %v839
    %v966 = vpack.c.b16 %v847, %v840
    %v967 = vpack.c.b16 %v848, %v841
    %v968 = vpack.c.b16 %v856, %v849
    %v969 = vpack.c.b16 %v857, %v850
    %v970 = vpack.c.b16 %v858, %v851
    %v971 = vpack.c.b16 %v859, %v852
    %v972 = vpack.c.b16 %v860, %v853
    %v973 = vpack.c.b16 %v861, %v854
    %v974 = vpack.c.b16 %v862, %v855
    %1087 = vmatprep.subr.bf16.mxu0 %v864
    %1088 = vmatpush1.bf16.msra.mxu0 %v863
    %1089 = vmatprep.subr.bf16.mxu0 %v871
    %1090 = vmatpush1.bf16.msra.mxu0 %v870
    %1091 = vmatprep.subr.bf16.mxu0 %v878
    %1092 = vmatpush1.bf16.msra.mxu0 %v877
    %1093 = vmatprep.subr.bf16.mxu0 %v885
    %1094 = vmatpush1.bf16.msra.mxu0 %v884
    %1095 = vmatprep.subr.bf16.mxu0 %v892
    %1096 = vmatpush1.bf16.msra.mxu0 %v891
    %1097 = vmatprep.subr.bf16.mxu0 %v899
    %1098 = vmatpush1.bf16.msra.mxu0 %v898
    %1099 = vmatprep.subr.bf16.mxu0 %v906
    %1100 = vmatpush1.bf16.msra.mxu0 %v905
    %1101 = vmatprep.subr.bf16.mxu0 %v913
    %1102 = vmatpush1.bf16.msra.mxu0 %v912
    %1103 = vmatprep.subr.bf16.mxu0 %v920
    %1104 = vmatpush1.bf16.msra.mxu0 %v919
    %1105 = vmatprep.subr.bf16.mxu0 %v927
    %1106 = vmatpush1.bf16.msra.mxu0 %v926
    %1107 = vmatprep.subr.bf16.mxu0 %v934
    %1108 = vmatpush1.bf16.msra.mxu0 %v933
    %1109 = vmatprep.subr.bf16.mxu0 %v941
    %1110 = vmatpush1.bf16.msra.mxu0 %v940
    %1111 = vmatprep.subr.bf16.mxu0 %v948
    %1112 = vmatpush1.bf16.msra.mxu0 %v947
    %1113 = vmatprep.subr.bf16.mxu0 %v955
    %1114 = vmatpush1.bf16.msra.mxu0 %v954
    %1115 = vmatprep.subr.bf16.mxu0 %v962
    %1116 = vmatpush1.bf16.msra.mxu0 %v961
    %1117 = vmatprep.subr.bf16.mxu0 %v969
    %1118 = vmatpush1.bf16.msra.mxu0 %v968
    %1119 = vmatprep.mubr.bf16.mxu0 %v345
    %1120 = vmatmul.mubr.bf16.gmra.mrb[0].mxu0 %v344
    %v1121 = vpop.f32.mrb[0].mxu0
    %v1122 = vadd.f32 %v479, %v1121
    %v1123 = vpop.f32.mrb[0].mxu0
    %v1124 = vadd.f32 %v483, %v1123
    %v1125 = vpop.f32.mrb[0].mxu0
    %v1126 = vpop.f32.mrb[0].mxu0
    %1127 = vdwg.mxu0
    %1128 = vmatprep.subr.bf16.mxu0 %v866
    %1129 = vmatpush1.bf16.msra.mxu0 %v865
    %1130 = vmatprep.subr.bf16.mxu0 %v873
    %1131 = vmatpush1.bf16.msra.mxu0 %v872
    %1132 = vmatprep.subr.bf16.mxu0 %v880
    %1133 = vmatpush1.bf16.msra.mxu0 %v879
    %1134 = vmatprep.subr.bf16.mxu0 %v887
    %1135 = vmatpush1.bf16.msra.mxu0 %v886
    %1136 = vmatprep.subr.bf16.mxu0 %v894
    %1137 = vmatpush1.bf16.msra.mxu0 %v893
    %1138 = vmatprep.subr.bf16.mxu0 %v901
    %1139 = vmatpush1.bf16.msra.mxu0 %v900
    %1140 = vmatprep.subr.bf16.mxu0 %v908
    %1141 = vmatpush1.bf16.msra.mxu0 %v907
    %1142 = vmatprep.subr.bf16.mxu0 %v915
    %1143 = vmatpush1.bf16.msra.mxu0 %v914
    %1144 = vmatprep.subr.bf16.mxu0 %v922
    %1145 = vmatpush1.bf16.msra.mxu0 %v921
    %1146 = vmatprep.subr.bf16.mxu0 %v929
    %1147 = vmatpush1.bf16.msra.mxu0 %v928
    %1148 = vmatprep.subr.bf16.mxu0 %v936
    %1149 = vmatpush1.bf16.msra.mxu0 %v935
    %1150 = vmatprep.subr.bf16.mxu0 %v943
    %1151 = vmatpush1.bf16.msra.mxu0 %v942
    %1152 = vmatprep.subr.bf16.mxu0 %v950
    %1153 = vmatpush1.bf16.msra.mxu0 %v949
    %1154 = vmatprep.subr.bf16.mxu0 %v957
    %1155 = vmatpush1.bf16.msra.mxu0 %v956
    %1156 = vmatprep.subr.bf16.mxu0 %v964
    %1157 = vmatpush1.bf16.msra.mxu0 %v963
    %1158 = vmatprep.subr.bf16.mxu0 %v971
    %1159 = vmatpush1.bf16.msra.mxu0 %v970
    %1160 = vmatprep.mubr.bf16.mxu0 %v345
    %1161 = vmatmul.mubr.bf16.gmra.mrb[0].mxu0 %v344
    %v1162 = vpop.f32.mrb[0].mxu0
    %v1163 = vadd.f32 %v487, %v1162
    %v1164 = vpop.f32.mrb[0].mxu0
    %v1165 = vadd.f32 %v491, %v1164
    %v1166 = vpop.f32.mrb[0].mxu0
    %v1167 = vpop.f32.mrb[0].mxu0
    %1168 = vdwg.mxu0
    %1169 = vmatprep.subr.bf16.mxu0 %v868
    %1170 = vmatpush1.bf16.msra.mxu0 %v867
    %1171 = vmatprep.subr.bf16.mxu0 %v875
    %1172 = vmatpush1.bf16.msra.mxu0 %v874
    %1173 = vmatprep.subr.bf16.mxu0 %v882
    %1174 = vmatpush1.bf16.msra.mxu0 %v881
    %1175 = vmatprep.subr.bf16.mxu0 %v889
    %1176 = vmatpush1.bf16.msra.mxu0 %v888
    %1177 = vmatprep.subr.bf16.mxu0 %v896
    %1178 = vmatpush1.bf16.msra.mxu0 %v895
    %1179 = vmatprep.subr.bf16.mxu0 %v903
    %1180 = vmatpush1.bf16.msra.mxu0 %v902
    %1181 = vmatprep.subr.bf16.mxu0 %v910
    %1182 = vmatpush1.bf16.msra.mxu0 %v909
    %1183 = vmatprep.subr.bf16.mxu0 %v917
    %1184 = vmatpush1.bf16.msra.mxu0 %v916
    %1185 = vmatprep.subr.bf16.mxu0 %v924
    %1186 = vmatpush1.bf16.msra.mxu0 %v923
    %1187 = vmatprep.subr.bf16.mxu0 %v931
    %1188 = vmatpush1.bf16.msra.mxu0 %v930
    %1189 = vmatprep.subr.bf16.mxu0 %v938
    %1190 = vmatpush1.bf16.msra.mxu0 %v937
    %1191 = vmatprep.subr.bf16.mxu0 %v945
    %1192 = vmatpush1.bf16.msra.mxu0 %v944
    %1193 = vmatprep.subr.bf16.mxu0 %v952
    %1194 = vmatpush1.bf16.msra.mxu0 %v951
    %1195 = vmatprep.subr.bf16.mxu0 %v959
    %1196 = vmatpush1.bf16.msra.mxu0 %v958
    %1197 = vmatprep.subr.bf16.mxu0 %v966
    %1198 = vmatpush1.bf16.msra.mxu0 %v965
    %1199 = vmatprep.subr.bf16.mxu0 %v973
    %1200 = vmatpush1.bf16.msra.mxu0 %v972
    %1201 = vmatprep.mubr.bf16.mxu0 %v345
    %1202 = vmatmul.mubr.bf16.gmra.mrb[0].mxu0 %v344
    %v1203 = vpop.f32.mrb[0].mxu0
    %v1204 = vadd.f32 %v495, %v1203
    %v1205 = vpop.f32.mrb[0].mxu0
    %v1206 = vadd.f32 %v499, %v1205
    %v1207 = vpop.f32.mrb[0].mxu0
    %v1208 = vpop.f32.mrb[0].mxu0
    %1209 = vdwg.mxu0
    %1210 = vmatprep.subr.bf16.mxu0 0
    %1211 = vmatpush1.bf16.msra.mxu0 %v869
    %1212 = vmatprep.subr.bf16.mxu0 0
    %1213 = vmatpush1.bf16.msra.mxu0 %v876
    %1214 = vmatprep.subr.bf16.mxu0 0
    %1215 = vmatpush1.bf16.msra.mxu0 %v883
    %1216 = vmatprep.subr.bf16.mxu0 0
    %1217 = vmatpush1.bf16.msra.mxu0 %v890
    %1218 = vmatprep.subr.bf16.mxu0 0
    %1219 = vmatpush1.bf16.msra.mxu0 %v897
    %1220 = vmatprep.subr.bf16.mxu0 0
    %1221 = vmatpush1.bf16.msra.mxu0 %v904
    %1222 = vmatprep.subr.bf16.mxu0 0
    %1223 = vmatpush1.bf16.msra.mxu0 %v911
    %1224 = vmatprep.subr.bf16.mxu0 0
    %1225 = vmatpush1.bf16.msra.mxu0 %v918
    %1226 = vmatprep.subr.bf16.mxu0 0
    %1227 = vmatpush1.bf16.msra.mxu0 %v925
    %1228 = vmatprep.subr.bf16.mxu0 0
    %1229 = vmatpush1.bf16.msra.mxu0 %v932
    %1230 = vmatprep.subr.bf16.mxu0 0
    %1231 = vmatpush1.bf16.msra.mxu0 %v939
    %1232 = vmatprep.subr.bf16.mxu0 0
    %1233 = vmatpush1.bf16.msra.mxu0 %v946
    %1234 = vmatprep.subr.bf16.mxu0 0
    %1235 = vmatpush1.bf16.msra.mxu0 %v953
    %1236 = vmatprep.subr.bf16.mxu0 0
    %1237 = vmatpush1.bf16.msra.mxu0 %v960
    %1238 = vmatprep.subr.bf16.mxu0 0
    %1239 = vmatpush1.bf16.msra.mxu0 %v967
    %1240 = vmatprep.subr.bf16.mxu0 0
    %1241 = vmatpush1.bf16.msra.mxu0 %v974
    %1242 = vmatprep.mubr.bf16.mxu0 %v345
    %1243 = vmatmul.mubr.bf16.gmra.mrb[0].mxu0 %v344
    %v1244 = vpop.f32.mrb[0].mxu0
    %v1245 = vadd.f32 %v503, %v1244
    %v1246 = vpop.f32.mrb[0].mxu0
    %v1247 = vpop.f32.mrb[0].mxu0
    %v1248 = vpop.f32.mrb[0].mxu0
    %1249 = vdwg.mxu0
    %v1250 = vtanh.pop %v1122
    %v1251 = vtanh.pop %v1124
    %v1252 = vtanh.pop %v1163
    %v1253 = vtanh.pop %v1165
    %v1254 = vtanh.pop %v1204
    %v1255 = vtanh.pop %v1206
    %v1256 = vtanh.pop %v1245
    %1257 = vst [vmem:[%s10] sm:$0xff] %v1250
    %1258 = vst [vmem:[%s10 + $0x8] sm:$0xff] %v1251
    %1259 = vst [vmem:[%s10 + $0x10] sm:$0xff] %v1252
    %1260 = vst [vmem:[%s10 + $0x18] sm:$0xff] %v1253
    %1261 = vst [vmem:[%s10 + $0x20] sm:$0xff] %v1254
    %1262 = vst [vmem:[%s10 + $0x28] sm:$0xff] %v1255
    %1263 = vst [vmem:[%s10 + $0x30] sm:$0xff] %v1256
    // Predicated region
    $region46: #{generator_forward.3} parent=1 // pred_check
      _
    $region47: #{generator_forward.3} parent=1 // pred_check_branch
      %1265 = sbr.rel (0) target = $region49
    $region48: #{generator_forward.3} parent=1 // pred_region
      _
    $region49: #{generator_forward.3} parent=1 // pred_fallthru
      _
    // Predicated region
    $region50: #{generator_forward.3} parent=1 // pred_check
      _
    $region51: #{generator_forward.3} parent=1 // pred_check_branch
      %1267 = sbr.rel (0) target = $region53
    $region52: #{generator_forward.3} parent=1 // pred_region
      _
    $region53: #{generator_forward.3} parent=1 // pred_fallthru
      _
    %1268 = vsyncpa [#allocation3], 1

</llo_original>
